<compile_context>
chip_gen: v7x
topology: tpu7x:2x2x1
jax: 0.10.0
libtpu: 0.0.40
codegen_flags: <defaults>
</compile_context>

<pallas_src>
import functools

import jax
import jax.numpy as jnp
from jax.experimental import pallas as pl
from jax.experimental.pallas import tpu as pltpu


def _fold_pconv_weights(w3, wp):
    """Fold the 1x1 pointwise weights into the partial 3x3 conv weights.

    w3: (3, 3, Cp, Cp) HWIO partial-conv weights (no bias).
    wp: (C, Cout) pointwise weights (Cin, Cout) (no bias).
    Returns B: (Cout, 9*C) such that, with `stacked` = the 9 shifted
    zero-padded copies of the (C, H*W) activation stacked along channels
    (tap-major, channel-minor), B @ stacked == pointwise(partial_conv3(x)).
    """
    Cp = w3.shape[2]
    C, Cout = wp.shape
    # A[kh, kw, co, ci] = sum_cm w3[kh, kw, ci, cm] * wp[cm, co]
    A = jnp.einsum("hwic,cd->hwdi", w3, wp[:Cp, :],
                   precision=jax.lax.Precision.HIGHEST)        # (3,3,Cout,Cp)
    B = jnp.zeros((3, 3, Cout, C), dtype=jnp.float32)
    B = B.at[..., :Cp].set(A)
    # Untouched channels (Cp..C-1) only contribute through the centre tap.
    B = B.at[1, 1, :, Cp:].set(wp[Cp:, :].T)
    return B.transpose(2, 0, 1, 3).reshape(Cout, 9 * C)


_OFFSETS = [(dh, dw) for dh in (-1, 0, 1) for dw in (-1, 0, 1)]


def _make_masks(H, W, bt):
    """Host-side boundary masks for the 8 off-centre taps: (8, bt*H*W) f32."""
    HW = H * W
    pos = jnp.arange(HW, dtype=jnp.int32)
    row = pos // W
    col = pos - row * W
    rows = []
    for dh, dw in _OFFSETS:
        if dh == 0 and dw == 0:
            continue
        valid = jnp.ones((HW,), dtype=jnp.bool_)
        if dh == -1:
            valid = valid & (row >= 1)
        elif dh == 1:
            valid = valid & (row <= H - 2)
        if dw == -1:
            valid = valid & (col >= 1)
        elif dw == 1:
            valid = valid & (col <= W - 2)
        rows.append(valid)
    m = jnp.stack(rows, axis=0).astype(jnp.float32)            # (8, HW)
    return jnp.tile(m, (1, bt))                                # (8, bt*HW)


def _decoder_block_kernel(x_ref, b0_ref, b1_ref, masks_ref, out_ref,
                          stacked_ref, *, H, W, C, Bt):
    """Fused conv0 -> conv1 -> +residual for one batch tile, (C, Bt*HW) layout."""
    HW = H * W
    L = Bt * HW

    def fill_stacked(src_f32):
        # Write the 9 shifted, zero-masked copies of src (C, L) directly into
        # the reused bf16 scratch (tap-major, channel-minor rows).
        mi = 0
        for t, (dh, dw) in enumerate(_OFFSETS):
            s = dh * W + dw
            piece = src_f32 if s == 0 else pltpu.roll(
                src_f32, shift=(-s) % L, axis=1)
            if (dh, dw) != (0, 0):
                piece = piece * masks_ref[pl.ds(mi, 1), :]     # (1, L) bcast
                mi += 1
            stacked_ref[pl.ds(t * C, C), :] = piece.astype(stacked_ref.dtype)

    # Gather the batch tile as (C, Bt*HW): channels in sublanes, batch*pixels
    # in lanes (lane-dense loads/stores, one wide matmul per pconv block).
    x_imgs = [x_ref[b].astype(jnp.float32) for b in range(Bt)]
    xt = x_imgs[0] if Bt == 1 else jnp.concatenate(x_imgs, axis=1)   # (C, L)

    # conv0: partial 3x3 + folded 1x1 + ReLU — one MXU matmul (bf16 in, f32 acc).
    fill_stacked(xt)
    y0 = jnp.dot(b0_ref[...], stacked_ref[...],
                 preferred_element_type=jnp.float32)
    y0 = jnp.maximum(y0, 0.0)

    # conv1: partial 3x3 + folded 1x1, no ReLU (reuses the same scratch).
    fill_stacked(y0)
    y1 = jnp.dot(b1_ref[...], stacked_ref[...],
                 preferred_element_type=jnp.float32)

    res = y1 + xt                                              # residual (f32)
    for b in range(Bt):
        out_ref[b] = res[:, b * HW:(b + 1) * HW].astype(out_ref.dtype)


def decoder_block_forward(x_nchw, params, *, batch_tile=None):
    """DecoderBlock.forward.  x_nchw: (N, C, H, W) float32 (PyTorch layout)."""
    w3_0, wp_0, w3_1, wp_1 = params
    N, C, H, W = x_nchw.shape
    HW = H * W

    if batch_tile is None:
        # Whole batch per step at small N (amortize per-step overhead, widen
        # the matmul lanes); at N>=4 split in two so both v7x TCs stay busy.
        batch_tile = N if (N < 4 or N % 2 != 0) else N // 2
    bt = batch_tile
    assert N % bt == 0, (N, bt)

    # Host-side weight folding is tiny; feed the MXU bf16 operands.
    b0 = _fold_pconv_weights(w3_0, wp_0).astype(jnp.bfloat16)  # (C, 9C)
    b1 = _fold_pconv_weights(w3_1, wp_1).astype(jnp.bfloat16)  # (C, 9C)
    masks = _make_masks(H, W, bt)                              # (8, bt*HW)
    x = x_nchw.reshape(N, C, HW)      # free reshape: NCHW consumed directly

    kernel = functools.partial(_decoder_block_kernel, H=H, W=W, C=C, Bt=bt)
    y = pl.pallas_call(
        kernel,
        out_shape=jax.ShapeDtypeStruct((N, C, HW), x_nchw.dtype),
        grid_spec=pltpu.PrefetchScalarGridSpec(
            num_scalar_prefetch=0,
            grid=(N // bt,),
            in_specs=[
                pl.BlockSpec((bt, C, HW), lambda i: (i, 0, 0)),
                pl.BlockSpec((C, 9 * C), lambda i: (0, 0)),
                pl.BlockSpec((C, 9 * C), lambda i: (0, 0)),
                pl.BlockSpec((8, bt * HW), lambda i: (0, 0)),
            ],
            out_specs=pl.BlockSpec((bt, C, HW), lambda i: (i, 0, 0)),
            scratch_shapes=[pltpu.VMEM((9 * C, bt * HW), jnp.bfloat16)],
        ),
        input_output_aliases={0: 0},
        compiler_params=pltpu.CompilerParams(
            dimension_semantics=("parallel",)),
    )(x, b0, b1, masks)
    return y.reshape(N, C, H, W)


def _reference_forward(x_nchw, params):
    """Pure-JAX f32 reference matching the PyTorch module semantics."""
    w3_0, wp_0, w3_1, wp_1 = params
    x = jnp.transpose(x_nchw, (0, 2, 3, 1))

    def pconv_block(h, w3, wp, relu):
        Cp = w3.shape[2]
        y1 = jax.lax.conv_general_dilated(
            h[..., :Cp], w3, window_strides=(1, 1), padding="SAME",
            dimension_numbers=("NHWC", "HWIO", "NHWC"),
            precision=jax.lax.Precision.HIGHEST)
        hc = jnp.concatenate([y1, h[..., Cp:]], axis=-1)
        y = jnp.einsum("nhwc,cd->nhwd", hc, wp,
                       precision=jax.lax.Precision.HIGHEST)
        return jnp.maximum(y, 0.0) if relu else y

    y0 = pconv_block(x, w3_0, wp_0, True)
    y1 = pconv_block(y0, w3_1, wp_1, False)
    return jnp.transpose(y1 + x, (0, 3, 1, 2))


if __name__ == "__main__":
    # Shapes consistent with the module: residual add requires
    # in_channels == out_channels; n_div=4 -> partial-conv channels = C // 4.
    N, C, H, W = 2, 8, 16, 16
    n_div = 4
    Cp = C // n_div
    # dw_status = (C // n_div >= 32) is False here -> regular (groups=1)
    # 3x3 conv on the first Cp channels, as in the PyTorch module.

    key = jax.random.PRNGKey(0)
    k1, k2, k3, k4, kx = jax.random.split(key, 5)
    # Deterministic synthetic weights (HWIO / (Cin, Cout)); the pconv path of
    # the PyTorch module has no bias anywhere.
    w3_0 = 0.2 * jax.random.normal(k1, (3, 3, Cp, Cp), jnp.float32)
    wp_0 = 0.2 * jax.random.normal(k2, (C, C), jnp.float32)
    w3_1 = 0.2 * jax.random.normal(k3, (3, 3, Cp, Cp), jnp.float32)
    wp_1 = 0.2 * jax.random.normal(k4, (C, C), jnp.float32)
    params = (w3_0, wp_0, w3_1, wp_1)

    x = jax.random.normal(kx, (N, C, H, W), jnp.float32)

    out = decoder_block_forward(x, params)
    out = jax.block_until_ready(out)

    ref = _reference_forward(x, params)
    assert out.shape == (N, C, H, W), out.shape
    max_err = float(jnp.max(jnp.abs(out - ref)))
    # bf16 operands into the MXU (f32 accumulate) => slightly looser tolerance.
    assert jnp.allclose(out, ref, rtol=4e-2, atol=4e-2), max_err

    print("KERNEL_OK")
</pallas_src>

<mosaic_0001>
module attributes {stable_mosaic.version = 11 : i64} {
  func.func @_decoder_block_kernel(%arg0: i32, %arg1: memref<2x8x256xf32, #tpu.memory_space<vmem>>, %arg2: memref<8x72xbf16, #tpu.memory_space<vmem>>, %arg3: memref<8x72xbf16, #tpu.memory_space<vmem>>, %arg4: memref<8x512xf32, #tpu.memory_space<vmem>>, %arg5: memref<2x8x256xf32, #tpu.memory_space<vmem>>, %arg6: memref<72x512xbf16, #tpu.memory_space<vmem>>) attributes {dimension_semantics = [#tpu.dimension_semantics<parallel>], iteration_bounds = array<i64: 1>, scalar_prefetch = 0 : i64, scratch_operands = 1 : i64, tpu.core_type = #tpu.core_type<tc>, window_params = [{transform_indices = @transform_0, window_bounds = array<i64: 2, 8, 256>}, {pipeline_mode = #tpu.pipeline_mode<synchronous>, transform_indices = @transform_1, window_bounds = array<i64: 8, 72>}, {pipeline_mode = #tpu.pipeline_mode<synchronous>, transform_indices = @transform_2, window_bounds = array<i64: 8, 72>}, {pipeline_mode = #tpu.pipeline_mode<synchronous>, transform_indices = @transform_3, window_bounds = array<i64: 8, 512>}, {transform_indices = @transform_4, window_bounds = array<i64: 2, 8, 256>}]} {
    %c0 = arith.constant 0 : index
    %c0_0 = arith.constant 0 : index
    %c0_1 = arith.constant 0 : index
    %0 = vector.load %arg1[%c0, %c0_0, %c0_1] : memref<2x8x256xf32, #tpu.memory_space<vmem>>, vector<1x8x256xf32>
    %1 = vector.shape_cast %0 : vector<1x8x256xf32> to vector<8x256xf32>
    %c1 = arith.constant 1 : index
    %c0_2 = arith.constant 0 : index
    %c0_3 = arith.constant 0 : index
    %2 = vector.load %arg1[%c1, %c0_2, %c0_3] : memref<2x8x256xf32, #tpu.memory_space<vmem>>, vector<1x8x256xf32>
    %3 = vector.shape_cast %2 : vector<1x8x256xf32> to vector<8x256xf32>
    %4 = tpu.concatenate %1, %3 in 1 : vector<8x256xf32>, vector<8x256xf32> -> vector<8x512xf32>
    %c17_i32 = arith.constant 17 : i32
    %5 = tpu.dynamic_rotate %4 by %c17_i32 dim 1 : vector<8x512xf32>, i32 -> vector<8x512xf32>
    %c0_4 = arith.constant 0 : index
    %c0_5 = arith.constant 0 : index
    %6 = vector.load %arg4[%c0_4, %c0_5] : memref<8x512xf32, #tpu.memory_space<vmem>>, vector<1x512xf32>
    %7 = vector.broadcast %6 : vector<1x512xf32> to vector<8x512xf32>
    %8 = arith.mulf %5, %7 : vector<8x512xf32>
    %9 = arith.truncf %8 : vector<8x512xf32> to vector<8x512xbf16>
    %c0_6 = arith.constant 0 : index
    %c0_7 = arith.constant 0 : index
    %10 = vector.load %arg6[%c0_6, %c0_7] : memref<72x512xbf16, #tpu.memory_space<vmem>>, vector<8x512xbf16>
    tpu.vector_store %arg6[%c0_6, %c0_7], %9 {strides = array<i32>} : memref<72x512xbf16, #tpu.memory_space<vmem>>, vector<8x512xbf16>,
    %c16_i32 = arith.constant 16 : i32
    %11 = tpu.dynamic_rotate %4 by %c16_i32 dim 1 : vector<8x512xf32>, i32 -> vector<8x512xf32>
    %c1_8 = arith.constant 1 : index
    %c0_9 = arith.constant 0 : index
    %12 = vector.load %arg4[%c1_8, %c0_9] : memref<8x512xf32, #tpu.memory_space<vmem>>, vector<1x512xf32>
    %13 = vector.broadcast %12 : vector<1x512xf32> to vector<8x512xf32>
    %14 = arith.mulf %11, %13 : vector<8x512xf32>
    %15 = arith.truncf %14 : vector<8x512xf32> to vector<8x512xbf16>
    %c8 = arith.constant 8 : index
    %c0_10 = arith.constant 0 : index
    %16 = vector.load %arg6[%c8, %c0_10] : memref<72x512xbf16, #tpu.memory_space<vmem>>, vector<8x512xbf16>
    tpu.vector_store %arg6[%c8, %c0_10], %15 {strides = array<i32>} : memref<72x512xbf16, #tpu.memory_space<vmem>>, vector<8x512xbf16>,
    %c15_i32 = arith.constant 15 : i32
    %17 = tpu.dynamic_rotate %4 by %c15_i32 dim 1 : vector<8x512xf32>, i32 -> vector<8x512xf32>
    %c2 = arith.constant 2 : index
    %c0_11 = arith.constant 0 : index
    %18 = vector.load %arg4[%c2, %c0_11] : memref<8x512xf32, #tpu.memory_space<vmem>>, vector<1x512xf32>
    %19 = vector.broadcast %18 : vector<1x512xf32> to vector<8x512xf32>
    %20 = arith.mulf %17, %19 : vector<8x512xf32>
    %21 = arith.truncf %20 : vector<8x512xf32> to vector<8x512xbf16>
    %c16 = arith.constant 16 : index
    %c0_12 = arith.constant 0 : index
    %22 = vector.load %arg6[%c16, %c0_12] : memref<72x512xbf16, #tpu.memory_space<vmem>>, vector<8x512xbf16>
    tpu.vector_store %arg6[%c16, %c0_12], %21 {strides = array<i32>} : memref<72x512xbf16, #tpu.memory_space<vmem>>, vector<8x512xbf16>,
    %c1_i32 = arith.constant 1 : i32
    %23 = tpu.dynamic_rotate %4 by %c1_i32 dim 1 : vector<8x512xf32>, i32 -> vector<8x512xf32>
    %c3 = arith.constant 3 : index
    %c0_13 = arith.constant 0 : index
    %24 = vector.load %arg4[%c3, %c0_13] : memref<8x512xf32, #tpu.memory_space<vmem>>, vector<1x512xf32>
    %25 = vector.broadcast %24 : vector<1x512xf32> to vector<8x512xf32>
    %26 = arith.mulf %23, %25 : vector<8x512xf32>
    %27 = arith.truncf %26 : vector<8x512xf32> to vector<8x512xbf16>
    %c24 = arith.constant 24 : index
    %c0_14 = arith.constant 0 : index
    %28 = vector.load %arg6[%c24, %c0_14] : memref<72x512xbf16, #tpu.memory_space<vmem>>, vector<8x512xbf16>
    tpu.vector_store %arg6[%c24, %c0_14], %27 {strides = array<i32>} : memref<72x512xbf16, #tpu.memory_space<vmem>>, vector<8x512xbf16>,
    %29 = arith.truncf %4 : vector<8x512xf32> to vector<8x512xbf16>
    %c32 = arith.constant 32 : index
    %c0_15 = arith.constant 0 : index
    %30 = vector.load %arg6[%c32, %c0_15] : memref<72x512xbf16, #tpu.memory_space<vmem>>, vector<8x512xbf16>
    tpu.vector_store %arg6[%c32, %c0_15], %29 {strides = array<i32>} : memref<72x512xbf16, #tpu.memory_space<vmem>>, vector<8x512xbf16>,
    %c511_i32 = arith.constant 511 : i32
    %31 = tpu.dynamic_rotate %4 by %c511_i32 dim 1 : vector<8x512xf32>, i32 -> vector<8x512xf32>
    %c4 = arith.constant 4 : index
    %c0_16 = arith.constant 0 : index
    %32 = vector.load %arg4[%c4, %c0_16] : memref<8x512xf32, #tpu.memory_space<vmem>>, vector<1x512xf32>
    %33 = vector.broadcast %32 : vector<1x512xf32> to vector<8x512xf32>
    %34 = arith.mulf %31, %33 : vector<8x512xf32>
    %35 = arith.truncf %34 : vector<8x512xf32> to vector<8x512xbf16>
    %c40 = arith.constant 40 : index
    %c0_17 = arith.constant 0 : index
    %36 = vector.load %arg6[%c40, %c0_17] : memref<72x512xbf16, #tpu.memory_space<vmem>>, vector<8x512xbf16>
    tpu.vector_store %arg6[%c40, %c0_17], %35 {strides = array<i32>} : memref<72x512xbf16, #tpu.memory_space<vmem>>, vector<8x512xbf16>,
    %c497_i32 = arith.constant 497 : i32
    %37 = tpu.dynamic_rotate %4 by %c497_i32 dim 1 : vector<8x512xf32>, i32 -> vector<8x512xf32>
    %c5 = arith.constant 5 : index
    %c0_18 = arith.constant 0 : index
    %38 = vector.load %arg4[%c5, %c0_18] : memref<8x512xf32, #tpu.memory_space<vmem>>, vector<1x512xf32>
    %39 = vector.broadcast %38 : vector<1x512xf32> to vector<8x512xf32>
    %40 = arith.mulf %37, %39 : vector<8x512xf32>
    %41 = arith.truncf %40 : vector<8x512xf32> to vector<8x512xbf16>
    %c48 = arith.constant 48 : index
    %c0_19 = arith.constant 0 : index
    %42 = vector.load %arg6[%c48, %c0_19] : memref<72x512xbf16, #tpu.memory_space<vmem>>, vector<8x512xbf16>
    tpu.vector_store %arg6[%c48, %c0_19], %41 {strides = array<i32>} : memref<72x512xbf16, #tpu.memory_space<vmem>>, vector<8x512xbf16>,
    %c496_i32 = arith.constant 496 : i32
    %43 = tpu.dynamic_rotate %4 by %c496_i32 dim 1 : vector<8x512xf32>, i32 -> vector<8x512xf32>
    %c6 = arith.constant 6 : index
    %c0_20 = arith.constant 0 : index
    %44 = vector.load %arg4[%c6, %c0_20] : memref<8x512xf32, #tpu.memory_space<vmem>>, vector<1x512xf32>
    %45 = vector.broadcast %44 : vector<1x512xf32> to vector<8x512xf32>
    %46 = arith.mulf %43, %45 : vector<8x512xf32>
    %47 = arith.truncf %46 : vector<8x512xf32> to vector<8x512xbf16>
    %c56 = arith.constant 56 : index
    %c0_21 = arith.constant 0 : index
    %48 = vector.load %arg6[%c56, %c0_21] : memref<72x512xbf16, #tpu.memory_space<vmem>>, vector<8x512xbf16>
    tpu.vector_store %arg6[%c56, %c0_21], %47 {strides = array<i32>} : memref<72x512xbf16, #tpu.memory_space<vmem>>, vector<8x512xbf16>,
    %c495_i32 = arith.constant 495 : i32
    %49 = tpu.dynamic_rotate %4 by %c495_i32 dim 1 : vector<8x512xf32>, i32 -> vector<8x512xf32>
    %c7 = arith.constant 7 : index
    %c0_22 = arith.constant 0 : index
    %50 = vector.load %arg4[%c7, %c0_22] : memref<8x512xf32, #tpu.memory_space<vmem>>, vector<1x512xf32>
    %51 = vector.broadcast %50 : vector<1x512xf32> to vector<8x512xf32>
    %52 = arith.mulf %49, %51 : vector<8x512xf32>
    %53 = arith.truncf %52 : vector<8x512xf32> to vector<8x512xbf16>
    %c64 = arith.constant 64 : index
    %c0_23 = arith.constant 0 : index
    %54 = vector.load %arg6[%c64, %c0_23] : memref<72x512xbf16, #tpu.memory_space<vmem>>, vector<8x512xbf16>
    tpu.vector_store %arg6[%c64, %c0_23], %53 {strides = array<i32>} : memref<72x512xbf16, #tpu.memory_space<vmem>>, vector<8x512xbf16>,
    %c0_24 = arith.constant 0 : index
    %c0_25 = arith.constant 0 : index
    %55 = vector.load %arg2[%c0_24, %c0_25] : memref<8x72xbf16, #tpu.memory_space<vmem>>, vector<8x72xbf16>
    %c0_26 = arith.constant 0 : index
    %c0_27 = arith.constant 0 : index
    %56 = vector.load %arg6[%c0_26, %c0_27] : memref<72x512xbf16, #tpu.memory_space<vmem>>, vector<72x512xbf16>
    %cst = arith.constant dense<0.000000e+00> : vector<8x512xf32>
    %57 = tpu.matmul %55, %56, %cst {dimension_numbers = #tpu.dot_dimension_numbers<[1], [0], [0], [1], [0, 0, 1, 1], [], []>} : vector<8x72xbf16>, vector<72x512xbf16>, vector<8x512xf32> -> vector<8x512xf32>
    %cst_28 = arith.constant 0.000000e+00 : f32
    %58 = vector.broadcast %cst_28 : f32 to vector<8x512xf32>
    %59 = arith.maximumf %57, %58 : vector<8x512xf32>
    %c17_i32_29 = arith.constant 17 : i32
    %60 = tpu.dynamic_rotate %59 by %c17_i32_29 dim 1 : vector<8x512xf32>, i32 -> vector<8x512xf32>
    %c0_30 = arith.constant 0 : index
    %c0_31 = arith.constant 0 : index
    %61 = vector.load %arg4[%c0_30, %c0_31] : memref<8x512xf32, #tpu.memory_space<vmem>>, vector<1x512xf32>
    %62 = vector.broadcast %61 : vector<1x512xf32> to vector<8x512xf32>
    %63 = arith.mulf %60, %62 : vector<8x512xf32>
    %64 = arith.truncf %63 : vector<8x512xf32> to vector<8x512xbf16>
    %c0_32 = arith.constant 0 : index
    %c0_33 = arith.constant 0 : index
    %65 = vector.load %arg6[%c0_32, %c0_33] : memref<72x512xbf16, #tpu.memory_space<vmem>>, vector<8x512xbf16>
    tpu.vector_store %arg6[%c0_32, %c0_33], %64 {strides = array<i32>} : memref<72x512xbf16, #tpu.memory_space<vmem>>, vector<8x512xbf16>,
    %c16_i32_34 = arith.constant 16 : i32
    %66 = tpu.dynamic_rotate %59 by %c16_i32_34 dim 1 : vector<8x512xf32>, i32 -> vector<8x512xf32>
    %c1_35 = arith.constant 1 : index
    %c0_36 = arith.constant 0 : index
    %67 = vector.load %arg4[%c1_35, %c0_36] : memref<8x512xf32, #tpu.memory_space<vmem>>, vector<1x512xf32>
    %68 = vector.broadcast %67 : vector<1x512xf32> to vector<8x512xf32>
    %69 = arith.mulf %66, %68 : vector<8x512xf32>
    %70 = arith.truncf %69 : vector<8x512xf32> to vector<8x512xbf16>
    %c8_37 = arith.constant 8 : index
    %c0_38 = arith.constant 0 : index
    %71 = vector.load %arg6[%c8_37, %c0_38] : memref<72x512xbf16, #tpu.memory_space<vmem>>, vector<8x512xbf16>
    tpu.vector_store %arg6[%c8_37, %c0_38], %70 {strides = array<i32>} : memref<72x512xbf16, #tpu.memory_space<vmem>>, vector<8x512xbf16>,
    %c15_i32_39 = arith.constant 15 : i32
    %72 = tpu.dynamic_rotate %59 by %c15_i32_39 dim 1 : vector<8x512xf32>, i32 -> vector<8x512xf32>
    %c2_40 = arith.constant 2 : index
    %c0_41 = arith.constant 0 : index
    %73 = vector.load %arg4[%c2_40, %c0_41] : memref<8x512xf32, #tpu.memory_space<vmem>>, vector<1x512xf32>
    %74 = vector.broadcast %73 : vector<1x512xf32> to vector<8x512xf32>
    %75 = arith.mulf %72, %74 : vector<8x512xf32>
    %76 = arith.truncf %75 : vector<8x512xf32> to vector<8x512xbf16>
    %c16_42 = arith.constant 16 : index
    %c0_43 = arith.constant 0 : index
    %77 = vector.load %arg6[%c16_42, %c0_43] : memref<72x512xbf16, #tpu.memory_space<vmem>>, vector<8x512xbf16>
    tpu.vector_store %arg6[%c16_42, %c0_43], %76 {strides = array<i32>} : memref<72x512xbf16, #tpu.memory_space<vmem>>, vector<8x512xbf16>,
    %c1_i32_44 = arith.constant 1 : i32
    %78 = tpu.dynamic_rotate %59 by %c1_i32_44 dim 1 : vector<8x512xf32>, i32 -> vector<8x512xf32>
    %c3_45 = arith.constant 3 : index
    %c0_46 = arith.constant 0 : index
    %79 = vector.load %arg4[%c3_45, %c0_46] : memref<8x512xf32, #tpu.memory_space<vmem>>, vector<1x512xf32>
    %80 = vector.broadcast %79 : vector<1x512xf32> to vector<8x512xf32>
    %81 = arith.mulf %78, %80 : vector<8x512xf32>
    %82 = arith.truncf %81 : vector<8x512xf32> to vector<8x512xbf16>
    %c24_47 = arith.constant 24 : index
    %c0_48 = arith.constant 0 : index
    %83 = vector.load %arg6[%c24_47, %c0_48] : memref<72x512xbf16, #tpu.memory_space<vmem>>, vector<8x512xbf16>
    tpu.vector_store %arg6[%c24_47, %c0_48], %82 {strides = array<i32>} : memref<72x512xbf16, #tpu.memory_space<vmem>>, vector<8x512xbf16>,
    %84 = arith.truncf %59 : vector<8x512xf32> to vector<8x512xbf16>
    %c32_49 = arith.constant 32 : index
    %c0_50 = arith.constant 0 : index
    %85 = vector.load %arg6[%c32_49, %c0_50] : memref<72x512xbf16, #tpu.memory_space<vmem>>, vector<8x512xbf16>
    tpu.vector_store %arg6[%c32_49, %c0_50], %84 {strides = array<i32>} : memref<72x512xbf16, #tpu.memory_space<vmem>>, vector<8x512xbf16>,
    %c511_i32_51 = arith.constant 511 : i32
    %86 = tpu.dynamic_rotate %59 by %c511_i32_51 dim 1 : vector<8x512xf32>, i32 -> vector<8x512xf32>
    %c4_52 = arith.constant 4 : index
    %c0_53 = arith.constant 0 : index
    %87 = vector.load %arg4[%c4_52, %c0_53] : memref<8x512xf32, #tpu.memory_space<vmem>>, vector<1x512xf32>
    %88 = vector.broadcast %87 : vector<1x512xf32> to vector<8x512xf32>
    %89 = arith.mulf %86, %88 : vector<8x512xf32>
    %90 = arith.truncf %89 : vector<8x512xf32> to vector<8x512xbf16>
    %c40_54 = arith.constant 40 : index
    %c0_55 = arith.constant 0 : index
    %91 = vector.load %arg6[%c40_54, %c0_55] : memref<72x512xbf16, #tpu.memory_space<vmem>>, vector<8x512xbf16>
    tpu.vector_store %arg6[%c40_54, %c0_55], %90 {strides = array<i32>} : memref<72x512xbf16, #tpu.memory_space<vmem>>, vector<8x512xbf16>,
    %c497_i32_56 = arith.constant 497 : i32
    %92 = tpu.dynamic_rotate %59 by %c497_i32_56 dim 1 : vector<8x512xf32>, i32 -> vector<8x512xf32>
    %c5_57 = arith.constant 5 : index
    %c0_58 = arith.constant 0 : index
    %93 = vector.load %arg4[%c5_57, %c0_58] : memref<8x512xf32, #tpu.memory_space<vmem>>, vector<1x512xf32>
    %94 = vector.broadcast %93 : vector<1x512xf32> to vector<8x512xf32>
    %95 = arith.mulf %92, %94 : vector<8x512xf32>
    %96 = arith.truncf %95 : vector<8x512xf32> to vector<8x512xbf16>
    %c48_59 = arith.constant 48 : index
    %c0_60 = arith.constant 0 : index
    %97 = vector.load %arg6[%c48_59, %c0_60] : memref<72x512xbf16, #tpu.memory_space<vmem>>, vector<8x512xbf16>
    tpu.vector_store %arg6[%c48_59, %c0_60], %96 {strides = array<i32>} : memref<72x512xbf16, #tpu.memory_space<vmem>>, vector<8x512xbf16>,
    %c496_i32_61 = arith.constant 496 : i32
    %98 = tpu.dynamic_rotate %59 by %c496_i32_61 dim 1 : vector<8x512xf32>, i32 -> vector<8x512xf32>
    %c6_62 = arith.constant 6 : index
    %c0_63 = arith.constant 0 : index
    %99 = vector.load %arg4[%c6_62, %c0_63] : memref<8x512xf32, #tpu.memory_space<vmem>>, vector<1x512xf32>
    %100 = vector.broadcast %99 : vector<1x512xf32> to vector<8x512xf32>
    %101 = arith.mulf %98, %100 : vector<8x512xf32>
    %102 = arith.truncf %101 : vector<8x512xf32> to vector<8x512xbf16>
    %c56_64 = arith.constant 56 : index
    %c0_65 = arith.constant 0 : index
    %103 = vector.load %arg6[%c56_64, %c0_65] : memref<72x512xbf16, #tpu.memory_space<vmem>>, vector<8x512xbf16>
    tpu.vector_store %arg6[%c56_64, %c0_65], %102 {strides = array<i32>} : memref<72x512xbf16, #tpu.memory_space<vmem>>, vector<8x512xbf16>,
    %c495_i32_66 = arith.constant 495 : i32
    %104 = tpu.dynamic_rotate %59 by %c495_i32_66 dim 1 : vector<8x512xf32>, i32 -> vector<8x512xf32>
    %c7_67 = arith.constant 7 : index
    %c0_68 = arith.constant 0 : index
    %105 = vector.load %arg4[%c7_67, %c0_68] : memref<8x512xf32, #tpu.memory_space<vmem>>, vector<1x512xf32>
    %106 = vector.broadcast %105 : vector<1x512xf32> to vector<8x512xf32>
    %107 = arith.mulf %104, %106 : vector<8x512xf32>
    %108 = arith.truncf %107 : vector<8x512xf32> to vector<8x512xbf16>
    %c64_69 = arith.constant 64 : index
    %c0_70 = arith.constant 0 : index
    %109 = vector.load %arg6[%c64_69, %c0_70] : memref<72x512xbf16, #tpu.memory_space<vmem>>, vector<8x512xbf16>
    tpu.vector_store %arg6[%c64_69, %c0_70], %108 {strides = array<i32>} : memref<72x512xbf16, #tpu.memory_space<vmem>>, vector<8x512xbf16>,
    %c0_71 = arith.constant 0 : index
    %c0_72 = arith.constant 0 : index
    %110 = vector.load %arg3[%c0_71, %c0_72] : memref<8x72xbf16, #tpu.memory_space<vmem>>, vector<8x72xbf16>
    %c0_73 = arith.constant 0 : index
    %c0_74 = arith.constant 0 : index
    %111 = vector.load %arg6[%c0_73, %c0_74] : memref<72x512xbf16, #tpu.memory_space<vmem>>, vector<72x512xbf16>
    %cst_75 = arith.constant dense<0.000000e+00> : vector<8x512xf32>
    %112 = tpu.matmul %110, %111, %cst_75 {dimension_numbers = #tpu.dot_dimension_numbers<[1], [0], [0], [1], [0, 0, 1, 1], [], []>} : vector<8x72xbf16>, vector<72x512xbf16>, vector<8x512xf32> -> vector<8x512xf32>
    %113 = arith.addf %112, %4 : vector<8x512xf32>
    %114 = vector.extract_strided_slice %113 {offsets = [0, 0], sizes = [8, 256], strides = [1, 1]} : vector<8x512xf32> to vector<8x256xf32>
    %c0_76 = arith.constant 0 : index
    %c0_77 = arith.constant 0 : index
    %c0_78 = arith.constant 0 : index
    %115 = vector.load %arg5[%c0_76, %c0_77, %c0_78] : memref<2x8x256xf32, #tpu.memory_space<vmem>>, vector<1x8x256xf32>
    %116 = vector.shape_cast %115 : vector<1x8x256xf32> to vector<8x256xf32>
    %117 = vector.shape_cast %114 : vector<8x256xf32> to vector<1x8x256xf32>
    tpu.vector_store %arg5[%c0_76, %c0_77, %c0_78], %117 {strides = array<i32>} : memref<2x8x256xf32, #tpu.memory_space<vmem>>, vector<1x8x256xf32>,
    %118 = vector.extract_strided_slice %113 {offsets = [0, 256], sizes = [8, 256], strides = [1, 1]} : vector<8x512xf32> to vector<8x256xf32>
    %c1_79 = arith.constant 1 : index
    %c0_80 = arith.constant 0 : index
    %c0_81 = arith.constant 0 : index
    %119 = vector.load %arg5[%c1_79, %c0_80, %c0_81] : memref<2x8x256xf32, #tpu.memory_space<vmem>>, vector<1x8x256xf32>
    %120 = vector.shape_cast %119 : vector<1x8x256xf32> to vector<8x256xf32>
    %121 = vector.shape_cast %118 : vector<8x256xf32> to vector<1x8x256xf32>
    tpu.vector_store %arg5[%c1_79, %c0_80, %c0_81], %121 {strides = array<i32>} : memref<2x8x256xf32, #tpu.memory_space<vmem>>, vector<1x8x256xf32>,
    return
  }
  func.func @transform_0(%arg0: i32) -> (i32, i32, i32) {
    %c0_i32 = arith.constant 0 : i32
    %c0_i32_0 = arith.constant 0 : i32
    %c0_i32_1 = arith.constant 0 : i32
    return %arg0, %c0_i32, %c0_i32_0 : i32, i32, i32
  }
  func.func @transform_1(%arg0: i32) -> (i32, i32) {
    %c0_i32 = arith.constant 0 : i32
    %c0_i32_0 = arith.constant 0 : i32
    %c0_i32_1 = arith.constant 0 : i32
    return %c0_i32, %c0_i32_0 : i32, i32
  }
  func.func @transform_2(%arg0: i32) -> (i32, i32) {
    %c0_i32 = arith.constant 0 : i32
    %c0_i32_0 = arith.constant 0 : i32
    %c0_i32_1 = arith.constant 0 : i32
    return %c0_i32, %c0_i32_0 : i32, i32
  }
  func.func @transform_3(%arg0: i32) -> (i32, i32) {
    %c0_i32 = arith.constant 0 : i32
    %c0_i32_0 = arith.constant 0 : i32
    %c0_i32_1 = arith.constant 0 : i32
    return %c0_i32, %c0_i32_0 : i32, i32
  }
  func.func @transform_4(%arg0: i32) -> (i32, i32, i32) {
    %c0_i32 = arith.constant 0 : i32
    %c0_i32_0 = arith.constant 0 : i32
    %c0_i32_1 = arith.constant 0 : i32
    return %arg0, %c0_i32, %c0_i32_0 : i32, i32, i32
  }
}

</mosaic_0001>

<llo_original>
// kernel: tpu_custom_call.1
$region0: #{tpu_custom_call.1}
  #allocation0 [shape = 'u32[]', space=smem, size = 0x4, offset = 0x4, fixed_abs, tag = 'smem constant byte address 0x4 - core index']
  #allocation1 [shape = 'u32[144,128]{1,0:T(1,128)}', space=vmem, size = 0x12000, scoped, tag = 'internal scratch']
  #allocation2 [shape = 'bf16[72,512]{1,0:T(8,128)(2,1)}', space=vmem, size = 0x12000, scoped, tag = 'scratch operand']
  %s0 = inlined_call_operand.hbm [shape: f32[2,8,256], index: 0, kind: input, shape index: {}, may-alias: {0,4}]
  %s1 = inlined_call_operand.vmem [shape: bf16[8,72], index: 1, kind: input, shape index: {}]
  %s2 = inlined_call_operand.vmem [shape: bf16[8,72], index: 2, kind: input, shape index: {}]
  %s3 = inlined_call_operand.vmem [shape: f32[8,512], index: 3, kind: input, shape index: {}]
  %s4 = inlined_call_operand.hbm [shape: f32[2,8,256], index: 4, kind: output, shape index: {}, may-alias: {0,4}]
  %s5 = sld [smem:[#allocation0]]
  $region30: #{tpu_custom_call.1} parent=0
    _
  %s7 = ssub.s32 1, %s5
  %s8 = scalar_select 0, %s7, %s5
  $region1: #{tpu_custom_call.1} parent=0
    #allocation3 [shape = 'u8[16384]{0}', space=vmem, size = 0x4000, scoped, tag = 'input window, operand 0, single buffered']
    #allocation4 [shape = 's32[1]{0}', space=sflag, size = 0x4, scoped, tag = 'scoped memory for tpu_custom_call.1']
    #allocation5 [shape = 's32[1]{0}', space=sflag, size = 0x4, scoped, tag = 'scoped memory for tpu_custom_call.1']
    #allocation6 [shape = 'u8[16384]{0}', space=vmem, size = 0x4000, scoped, tag = 'output window, operand 0, single buffered']
    %9 = vsyncpa [#allocation4], 0
    %10 = vsyncpa [#allocation5], 0
    // Predicated region
    $region2: #{tpu_custom_call.1} parent=1 // pred_check
      _
    $region3: #{tpu_custom_call.1} parent=1 // pred_check_branch
      %12 = sbr.rel (0) target = $region5
    $region4: #{tpu_custom_call.1} parent=1 // pred_region
      %s14 = ssub.s32 512, 512
      %15 = vsyncadd [#allocation4], %s14
      %s16 = sshll.u32 [#allocation3], 4
      %s17 = int_to_ptr.vmem [resolvable:$true] %s16
      %22 = dma.hbm_to_vmem [thread:$0]  %s0, 512, %s17, [#allocation4], 256, 256, 16
    $region5: #{tpu_custom_call.1} parent=1 // pred_fallthru
      _
    // Predicated region
    $region6: #{tpu_custom_call.1} parent=1 // pred_check
      _
    $region7: #{tpu_custom_call.1} parent=1 // pred_check_branch
      %24 = sbr.rel (0) target = $region9
    $region8: #{tpu_custom_call.1} parent=1 // pred_region
      _
    $region9: #{tpu_custom_call.1} parent=1 // pred_fallthru
      _
    // Predicated region
    $region10: #{tpu_custom_call.1} parent=1 // pred_check
      _
    $region11: #{tpu_custom_call.1} parent=1 // pred_check_branch
      %26 = sbr.rel (0) target = $region13
    $region12: #{tpu_custom_call.1} parent=1 // pred_region
      _
    $region13: #{tpu_custom_call.1} parent=1 // pred_fallthru
      _
    // Predicated region
    $region14: #{tpu_custom_call.1} parent=1 // pred_check
      _
    $region15: #{tpu_custom_call.1} parent=1 // pred_check_branch
      %28 = sbr.rel (0) target = $region17
    $region16: #{tpu_custom_call.1} parent=1 // pred_region
      _
    $region17: #{tpu_custom_call.1} parent=1 // pred_fallthru
      _
    // Predicated region
    $region18: #{tpu_custom_call.1} parent=1 // pred_check
      _
    $region19: #{tpu_custom_call.1} parent=1 // pred_check_branch
      %30 = sbr.rel (0) target = $region21
    $region20: #{tpu_custom_call.1} parent=1 // pred_region
      %31 = dma.done [#allocation4], 512
    $region21: #{tpu_custom_call.1} parent=1 // pred_fallthru
      _
    %v33 = vld [vmem:[#allocation3] sm:$0xff]
    %v34 = vld [vmem:[#allocation3 + $0x8] sm:$0xff]
    %s35 = scalar_lea.vmem [#allocation3], 16
    %v36 = vld [vmem:[%s35] sm:$0xff]
    %v37 = vld [vmem:[%s35 + $0x8] sm:$0xff]
    %38 = vrot.lane.b32.xlu0 %v33, 17
    %v39 = vpop.permute.xlu0 %38
    %40 = vrot.lane.b32.xlu0 %v34, 17
    %v41 = vpop.permute.xlu0 %40
    %42 = vrot.lane.b32.xlu0 %v36, 17
    %v43 = vpop.permute.xlu0 %42
    %44 = vrot.lane.b32.xlu0 %v37, 17
    %v45 = vpop.permute.xlu0 %44
    %v46 = vlaneseq
    %v47 = vand.u32 %v46, 127
    %vm48 = vcmp.lt.s32.totalorder %v47, 17
    %v49 = vsel %vm48, %v43, %v45
    %v50 = vsel %vm48, %v41, %v43
    %v51 = vsel %vm48, %v39, %v41
    %v52 = vsel %vm48, %v45, %v39
    %v53 = vld [vmem:[%s3] ss:$8 sm:$0xf]
    %v55 = vlaneseq
    %v56 = vshrl.u32 %v55, 7
    %v57 = vsub.s32 0, %v56
    %v58 = vrot.slane %v53, %v57
    %v59 = vlaneseq
    %v60 = vshrl.u32 %v59, 7
    %v61 = vsub.s32 1, %v60
    %v62 = vrot.slane %v53, %v61
    %v63 = vlaneseq
    %v64 = vshrl.u32 %v63, 7
    %v65 = vsub.s32 2, %v64
    %v66 = vrot.slane %v53, %v65
    %v67 = vlaneseq
    %v68 = vshrl.u32 %v67, 7
    %v69 = vsub.s32 3, %v68
    %v70 = vrot.slane %v53, %v69
    %v75 = vmul.f32 %v52, %v58
    %v76 = vmul.f32 %v51, %v62
    %v77 = vmul.f32 %v50, %v66
    %v78 = vmul.f32 %v49, %v70
    %v79 = vpack.c.bf16 %v75, %v75
    %v80 = vpack.c.bf16 %v76, %v76
    %v81 = vpack.c.bf16 %v77, %v77
    %v82 = vpack.c.bf16 %v78, %v78
    %v87 = vunpack.c.l.b16 %v79
    %v88 = vunpack.c.l.b16 %v80
    %v89 = vunpack.c.l.b16 %v81
    %v90 = vunpack.c.l.b16 %v82
    %v91 = vpack.c.b16 %v88, %v87
    %v92 = vpack.c.b16 %v90, %v89
    %95 = vst [vmem:[#allocation2] sm:$0xff] %v91
    %96 = vst [vmem:[#allocation2 + $0x8] sm:$0xff] %v92
    %97 = vrot.lane.b32.xlu0 %v33, 16
    %v98 = vpop.permute.xlu0 %97
    %99 = vrot.lane.b32.xlu0 %v34, 16
    %v100 = vpop.permute.xlu0 %99
    %101 = vrot.lane.b32.xlu0 %v36, 16
    %v102 = vpop.permute.xlu0 %101
    %103 = vrot.lane.b32.xlu0 %v37, 16
    %v104 = vpop.permute.xlu0 %103
    %vm105 = vcmp.lt.s32.totalorder %v47, 16
    %v106 = vsel %vm105, %v102, %v104
    %v107 = vsel %vm105, %v100, %v102
    %v108 = vsel %vm105, %v98, %v100
    %v109 = vsel %vm105, %v104, %v98
    %s110 = scalar_lea.vmem %s3, 1
    %v111 = vld [vmem:[%s110] ss:$8 sm:$0xf]
    %v113 = vlaneseq
    %v114 = vshrl.u32 %v113, 7
    %v115 = vsub.s32 0, %v114
    %v116 = vrot.slane %v111, %v115
    %v117 = vlaneseq
    %v118 = vshrl.u32 %v117, 7
    %v119 = vsub.s32 1, %v118
    %v120 = vrot.slane %v111, %v119
    %v121 = vlaneseq
    %v122 = vshrl.u32 %v121, 7
    %v123 = vsub.s32 2, %v122
    %v124 = vrot.slane %v111, %v123
    %v125 = vlaneseq
    %v126 = vshrl.u32 %v125, 7
    %v127 = vsub.s32 3, %v126
    %v128 = vrot.slane %v111, %v127
    %v133 = vmul.f32 %v109, %v116
    %v134 = vmul.f32 %v108, %v120
    %v135 = vmul.f32 %v107, %v124
    %v136 = vmul.f32 %v106, %v128
    %v137 = vpack.c.bf16 %v133, %v133
    %v138 = vpack.c.bf16 %v134, %v134
    %v139 = vpack.c.bf16 %v135, %v135
    %v140 = vpack.c.bf16 %v136, %v136
    %v145 = vunpack.c.l.b16 %v137
    %v146 = vunpack.c.l.b16 %v138
    %v147 = vunpack.c.l.b16 %v139
    %v148 = vunpack.c.l.b16 %v140
    %v149 = vpack.c.b16 %v146, %v145
    %v150 = vpack.c.b16 %v148, %v147
    %153 = vst [vmem:[#allocation2 + $0x10] sm:$0xff] %v149
    %154 = vst [vmem:[#allocation2 + $0x18] sm:$0xff] %v150
    %155 = vrot.lane.b32.xlu0 %v33, 15
    %v156 = vpop.permute.xlu0 %155
    %157 = vrot.lane.b32.xlu0 %v34, 15
    %v158 = vpop.permute.xlu0 %157
    %159 = vrot.lane.b32.xlu0 %v36, 15
    %v160 = vpop.permute.xlu0 %159
    %161 = vrot.lane.b32.xlu0 %v37, 15
    %v162 = vpop.permute.xlu0 %161
    %vm163 = vcmp.lt.s32.totalorder %v47, 15
    %v164 = vsel %vm163, %v160, %v162
    %v165 = vsel %vm163, %v158, %v160
    %v166 = vsel %vm163, %v156, %v158
    %v167 = vsel %vm163, %v162, %v156
    %s168 = scalar_lea.vmem %s3, 2
    %v169 = vld [vmem:[%s168] ss:$8 sm:$0xf]
    %v171 = vlaneseq
    %v172 = vshrl.u32 %v171, 7
    %v173 = vsub.s32 0, %v172
    %v174 = vrot.slane %v169, %v173
    %v175 = vlaneseq
    %v176 = vshrl.u32 %v175, 7
    %v177 = vsub.s32 1, %v176
    %v178 = vrot.slane %v169, %v177
    %v179 = vlaneseq
    %v180 = vshrl.u32 %v179, 7
    %v181 = vsub.s32 2, %v180
    %v182 = vrot.slane %v169, %v181
    %v183 = vlaneseq
    %v184 = vshrl.u32 %v183, 7
    %v185 = vsub.s32 3, %v184
    %v186 = vrot.slane %v169, %v185
    %v191 = vmul.f32 %v167, %v174
    %v192 = vmul.f32 %v166, %v178
    %v193 = vmul.f32 %v165, %v182
    %v194 = vmul.f32 %v164, %v186
    %v195 = vpack.c.bf16 %v191, %v191
    %v196 = vpack.c.bf16 %v192, %v192
    %v197 = vpack.c.bf16 %v193, %v193
    %v198 = vpack.c.bf16 %v194, %v194
    %v203 = vunpack.c.l.b16 %v195
    %v204 = vunpack.c.l.b16 %v196
    %v205 = vunpack.c.l.b16 %v197
    %v206 = vunpack.c.l.b16 %v198
    %v207 = vpack.c.b16 %v204, %v203
    %v208 = vpack.c.b16 %v206, %v205
    %211 = vst [vmem:[#allocation2 + $0x20] sm:$0xff] %v207
    %212 = vst [vmem:[#allocation2 + $0x28] sm:$0xff] %v208
    %213 = vrot.lane.b32.xlu0 %v33, 1
    %v214 = vpop.permute.xlu0 %213
    %215 = vrot.lane.b32.xlu0 %v34, 1
    %v216 = vpop.permute.xlu0 %215
    %217 = vrot.lane.b32.xlu0 %v36, 1
    %v218 = vpop.permute.xlu0 %217
    %219 = vrot.lane.b32.xlu0 %v37, 1
    %v220 = vpop.permute.xlu0 %219
    %vm221 = vcmp.lt.s32.totalorder %v47, 1
    %v222 = vsel %vm221, %v218, %v220
    %v223 = vsel %vm221, %v216, %v218
    %v224 = vsel %vm221, %v214, %v216
    %v225 = vsel %vm221, %v220, %v214
    %s226 = scalar_lea.vmem %s3, 3
    %v227 = vld [vmem:[%s226] ss:$8 sm:$0xf]
    %v229 = vlaneseq
    %v230 = vshrl.u32 %v229, 7
    %v231 = vsub.s32 0, %v230
    %v232 = vrot.slane %v227, %v231
    %v233 = vlaneseq
    %v234 = vshrl.u32 %v233, 7
    %v235 = vsub.s32 1, %v234
    %v236 = vrot.slane %v227, %v235
    %v237 = vlaneseq
    %v238 = vshrl.u32 %v237, 7
    %v239 = vsub.s32 2, %v238
    %v240 = vrot.slane %v227, %v239
    %v241 = vlaneseq
    %v242 = vshrl.u32 %v241, 7
    %v243 = vsub.s32 3, %v242
    %v244 = vrot.slane %v227, %v243
    %v249 = vmul.f32 %v225, %v232
    %v250 = vmul.f32 %v224, %v236
    %v251 = vmul.f32 %v223, %v240
    %v252 = vmul.f32 %v222, %v244
    %v253 = vpack.c.bf16 %v249, %v249
    %v254 = vpack.c.bf16 %v250, %v250
    %v255 = vpack.c.bf16 %v251, %v251
    %v256 = vpack.c.bf16 %v252, %v252
    %v261 = vunpack.c.l.b16 %v253
    %v262 = vunpack.c.l.b16 %v254
    %v263 = vunpack.c.l.b16 %v255
    %v264 = vunpack.c.l.b16 %v256
    %v265 = vpack.c.b16 %v262, %v261
    %v266 = vpack.c.b16 %v264, %v263
    %269 = vst [vmem:[#allocation2 + $0x30] sm:$0xff] %v265
    %270 = vst [vmem:[#allocation2 + $0x38] sm:$0xff] %v266
    %v271 = vpack.c.bf16 %v33, %v33
    %v272 = vpack.c.bf16 %v34, %v34
    %v273 = vpack.c.bf16 %v36, %v36
    %v274 = vpack.c.bf16 %v37, %v37
    %v279 = vunpack.c.l.b16 %v271
    %v280 = vunpack.c.l.b16 %v272
    %v281 = vunpack.c.l.b16 %v273
    %v282 = vunpack.c.l.b16 %v274
    %v283 = vpack.c.b16 %v280, %v279
    %v284 = vpack.c.b16 %v282, %v281
    %287 = vst [vmem:[#allocation2 + $0x40] sm:$0xff] %v283
    %288 = vst [vmem:[#allocation2 + $0x48] sm:$0xff] %v284
    %289 = vrot.lane.b32.xlu0 %v33, 127
    %v290 = vpop.permute.xlu0 %289
    %291 = vrot.lane.b32.xlu0 %v34, 127
    %v292 = vpop.permute.xlu0 %291
    %293 = vrot.lane.b32.xlu0 %v36, 127
    %v294 = vpop.permute.xlu0 %293
    %295 = vrot.lane.b32.xlu0 %v37, 127
    %v296 = vpop.permute.xlu0 %295
    %vm297 = vcmp.lt.s32.totalorder %v47, 127
    %v298 = vsel %vm297, %v294, %v296
    %v299 = vsel %vm297, %v292, %v294
    %v300 = vsel %vm297, %v290, %v292
    %v301 = vsel %vm297, %v296, %v290
    %s302 = scalar_lea.vmem %s3, 4
    %v303 = vld [vmem:[%s302] ss:$8 sm:$0xf]
    %v305 = vlaneseq
    %v306 = vshrl.u32 %v305, 7
    %v307 = vsub.s32 0, %v306
    %v308 = vrot.slane %v303, %v307
    %v309 = vlaneseq
    %v310 = vshrl.u32 %v309, 7
    %v311 = vsub.s32 1, %v310
    %v312 = vrot.slane %v303, %v311
    %v313 = vlaneseq
    %v314 = vshrl.u32 %v313, 7
    %v315 = vsub.s32 2, %v314
    %v316 = vrot.slane %v303, %v315
    %v317 = vlaneseq
    %v318 = vshrl.u32 %v317, 7
    %v319 = vsub.s32 3, %v318
    %v320 = vrot.slane %v303, %v319
    %v325 = vmul.f32 %v300, %v308
    %v326 = vmul.f32 %v299, %v312
    %v327 = vmul.f32 %v298, %v316
    %v328 = vmul.f32 %v301, %v320
    %v329 = vpack.c.bf16 %v325, %v325
    %v330 = vpack.c.bf16 %v326, %v326
    %v331 = vpack.c.bf16 %v327, %v327
    %v332 = vpack.c.bf16 %v328, %v328
    %v337 = vunpack.c.l.b16 %v329
    %v338 = vunpack.c.l.b16 %v330
    %v339 = vunpack.c.l.b16 %v331
    %v340 = vunpack.c.l.b16 %v332
    %v341 = vpack.c.b16 %v338, %v337
    %v342 = vpack.c.b16 %v340, %v339
    %345 = vst [vmem:[#allocation2 + $0x50] sm:$0xff] %v341
    %346 = vst [vmem:[#allocation2 + $0x58] sm:$0xff] %v342
    %347 = vrot.lane.b32.xlu0 %v33, 113
    %v348 = vpop.permute.xlu0 %347
    %349 = vrot.lane.b32.xlu0 %v34, 113
    %v350 = vpop.permute.xlu0 %349
    %351 = vrot.lane.b32.xlu0 %v36, 113
    %v352 = vpop.permute.xlu0 %351
    %353 = vrot.lane.b32.xlu0 %v37, 113
    %v354 = vpop.permute.xlu0 %353
    %vm355 = vcmp.lt.s32.totalorder %v47, 113
    %v356 = vsel %vm355, %v352, %v354
    %v357 = vsel %vm355, %v350, %v352
    %v358 = vsel %vm355, %v348, %v350
    %v359 = vsel %vm355, %v354, %v348
    %s360 = scalar_lea.vmem %s3, 5
    %v361 = vld [vmem:[%s360] ss:$8 sm:$0xf]
    %v363 = vlaneseq
    %v364 = vshrl.u32 %v363, 7
    %v365 = vsub.s32 0, %v364
    %v366 = vrot.slane %v361, %v365
    %v367 = vlaneseq
    %v368 = vshrl.u32 %v367, 7
    %v369 = vsub.s32 1, %v368
    %v370 = vrot.slane %v361, %v369
    %v371 = vlaneseq
    %v372 = vshrl.u32 %v371, 7
    %v373 = vsub.s32 2, %v372
    %v374 = vrot.slane %v361, %v373
    %v375 = vlaneseq
    %v376 = vshrl.u32 %v375, 7
    %v377 = vsub.s32 3, %v376
    %v378 = vrot.slane %v361, %v377
    %v383 = vmul.f32 %v358, %v366
    %v384 = vmul.f32 %v357, %v370
    %v385 = vmul.f32 %v356, %v374
    %v386 = vmul.f32 %v359, %v378
    %v387 = vpack.c.bf16 %v383, %v383
    %v388 = vpack.c.bf16 %v384, %v384
    %v389 = vpack.c.bf16 %v385, %v385
    %v390 = vpack.c.bf16 %v386, %v386
    %v395 = vunpack.c.l.b16 %v387
    %v396 = vunpack.c.l.b16 %v388
    %v397 = vunpack.c.l.b16 %v389
    %v398 = vunpack.c.l.b16 %v390
    %v399 = vpack.c.b16 %v396, %v395
    %v400 = vpack.c.b16 %v398, %v397
    %403 = vst [vmem:[#allocation2 + $0x60] sm:$0xff] %v399
    %404 = vst [vmem:[#allocation2 + $0x68] sm:$0xff] %v400
    %405 = vrot.lane.b32.xlu0 %v33, 112
    %v406 = vpop.permute.xlu0 %405
    %407 = vrot.lane.b32.xlu0 %v34, 112
    %v408 = vpop.permute.xlu0 %407
    %409 = vrot.lane.b32.xlu0 %v36, 112
    %v410 = vpop.permute.xlu0 %409
    %411 = vrot.lane.b32.xlu0 %v37, 112
    %v412 = vpop.permute.xlu0 %411
    %vm413 = vcmp.lt.s32.totalorder %v47, 112
    %v414 = vsel %vm413, %v410, %v412
    %v415 = vsel %vm413, %v408, %v410
    %v416 = vsel %vm413, %v406, %v408
    %v417 = vsel %vm413, %v412, %v406
    %s418 = scalar_lea.vmem %s3, 6
    %v419 = vld [vmem:[%s418] ss:$8 sm:$0xf]
    %v421 = vlaneseq
    %v422 = vshrl.u32 %v421, 7
    %v423 = vsub.s32 0, %v422
    %v424 = vrot.slane %v419, %v423
    %v425 = vlaneseq
    %v426 = vshrl.u32 %v425, 7
    %v427 = vsub.s32 1, %v426
    %v428 = vrot.slane %v419, %v427
    %v429 = vlaneseq
    %v430 = vshrl.u32 %v429, 7
    %v431 = vsub.s32 2, %v430
    %v432 = vrot.slane %v419, %v431
    %v433 = vlaneseq
    %v434 = vshrl.u32 %v433, 7
    %v435 = vsub.s32 3, %v434
    %v436 = vrot.slane %v419, %v435
    %v441 = vmul.f32 %v416, %v424
    %v442 = vmul.f32 %v415, %v428
    %v443 = vmul.f32 %v414, %v432
    %v444 = vmul.f32 %v417, %v436
    %v445 = vpack.c.bf16 %v441, %v441
    %v446 = vpack.c.bf16 %v442, %v442
    %v447 = vpack.c.bf16 %v443, %v443
    %v448 = vpack.c.bf16 %v444, %v444
    %v453 = vunpack.c.l.b16 %v445
    %v454 = vunpack.c.l.b16 %v446
    %v455 = vunpack.c.l.b16 %v447
    %v456 = vunpack.c.l.b16 %v448
    %v457 = vpack.c.b16 %v454, %v453
    %v458 = vpack.c.b16 %v456, %v455
    %461 = vst [vmem:[#allocation2 + $0x70] sm:$0xff] %v457
    %462 = vst [vmem:[#allocation2 + $0x78] sm:$0xff] %v458
    %463 = vrot.lane.b32.xlu0 %v33, 111
    %v464 = vpop.permute.xlu0 %463
    %465 = vrot.lane.b32.xlu0 %v34, 111
    %v466 = vpop.permute.xlu0 %465
    %467 = vrot.lane.b32.xlu0 %v36, 111
    %v468 = vpop.permute.xlu0 %467
    %469 = vrot.lane.b32.xlu0 %v37, 111
    %v470 = vpop.permute.xlu0 %469
    %vm471 = vcmp.lt.s32.totalorder %v47, 111
    %v472 = vsel %vm471, %v468, %v470
    %v473 = vsel %vm471, %v466, %v468
    %v474 = vsel %vm471, %v464, %v466
    %v475 = vsel %vm471, %v470, %v464
    %s476 = scalar_lea.vmem %s3, 7
    %v477 = vld [vmem:[%s476] ss:$8 sm:$0xf]
    %v479 = vlaneseq
    %v480 = vshrl.u32 %v479, 7
    %v481 = vsub.s32 0, %v480
    %v482 = vrot.slane %v477, %v481
    %v483 = vlaneseq
    %v484 = vshrl.u32 %v483, 7
    %v485 = vsub.s32 1, %v484
    %v486 = vrot.slane %v477, %v485
    %v487 = vlaneseq
    %v488 = vshrl.u32 %v487, 7
    %v489 = vsub.s32 2, %v488
    %v490 = vrot.slane %v477, %v489
    %v491 = vlaneseq
    %v492 = vshrl.u32 %v491, 7
    %v493 = vsub.s32 3, %v492
    %v494 = vrot.slane %v477, %v493
    %v499 = vmul.f32 %v474, %v482
    %v500 = vmul.f32 %v473, %v486
    %v501 = vmul.f32 %v472, %v490
    %v502 = vmul.f32 %v475, %v494
    %v503 = vpack.c.bf16 %v499, %v499
    %v504 = vpack.c.bf16 %v500, %v500
    %v505 = vpack.c.bf16 %v501, %v501
    %v506 = vpack.c.bf16 %v502, %v502
    %v511 = vunpack.c.l.b16 %v503
    %v512 = vunpack.c.l.b16 %v504
    %v513 = vunpack.c.l.b16 %v505
    %v514 = vunpack.c.l.b16 %v506
    %v515 = vpack.c.b16 %v512, %v511
    %v516 = vpack.c.b16 %v514, %v513
    %519 = vst [vmem:[#allocation2 + $0x80] sm:$0xff] %v515
    %520 = vst [vmem:[#allocation2 + $0x88] sm:$0xff] %v516
    %v521 = vld [vmem:[%s1] sm:$0xf]
    %v522 = vld [vmem:[#allocation2] sm:$0xff]
    %v523 = vld [vmem:[#allocation2 + $0x8] sm:$0xff]
    %v524 = vld [vmem:[#allocation2 + $0x10] sm:$0xff]
    %v525 = vld [vmem:[#allocation2 + $0x18] sm:$0xff]
    %v526 = vld [vmem:[#allocation2 + $0x20] sm:$0xff]
    %v527 = vld [vmem:[#allocation2 + $0x28] sm:$0xff]
    %v528 = vld [vmem:[#allocation2 + $0x30] sm:$0xff]
    %v529 = vld [vmem:[#allocation2 + $0x38] sm:$0xff]
    %v530 = vld [vmem:[#allocation2 + $0x40] sm:$0xff]
    %v531 = vld [vmem:[#allocation2 + $0x48] sm:$0xff]
    %v532 = vld [vmem:[#allocation2 + $0x50] sm:$0xff]
    %v533 = vld [vmem:[#allocation2 + $0x58] sm:$0xff]
    %v534 = vld [vmem:[#allocation2 + $0x60] sm:$0xff]
    %v535 = vld [vmem:[#allocation2 + $0x68] sm:$0xff]
    %v536 = vld [vmem:[#allocation2 + $0x70] sm:$0xff]
    %v537 = vld [vmem:[#allocation2 + $0x78] sm:$0xff]
    %v538 = vld [vmem:[#allocation2 + $0x80] sm:$0xff]
    %v539 = vld [vmem:[#allocation2 + $0x88] sm:$0xff]
    %v558 = vunpack.c.l.b16 %v522
    %v559 = vunpack.c.h.b16 %v522
    %v560 = vunpack.c.l.b16 %v523
    %v561 = vunpack.c.h.b16 %v523
    %v562 = vunpack.c.l.b16 %v524
    %v563 = vunpack.c.h.b16 %v524
    %v564 = vunpack.c.l.b16 %v525
    %v565 = vunpack.c.h.b16 %v525
    %v566 = vunpack.c.l.b16 %v526
    %v567 = vunpack.c.h.b16 %v526
    %v568 = vunpack.c.l.b16 %v527
    %v569 = vunpack.c.h.b16 %v527
    %v570 = vunpack.c.l.b16 %v528
    %v571 = vunpack.c.h.b16 %v528
    %v572 = vunpack.c.l.b16 %v529
    %v573 = vunpack.c.h.b16 %v529
    %v574 = vunpack.c.l.b16 %v530
    %v575 = vunpack.c.h.b16 %v530
    %v576 = vunpack.c.l.b16 %v531
    %v577 = vunpack.c.h.b16 %v531
    %v578 = vunpack.c.l.b16 %v532
    %v579 = vunpack.c.h.b16 %v532
    %v580 = vunpack.c.l.b16 %v533
    %v581 = vunpack.c.h.b16 %v533
    %v582 = vunpack.c.l.b16 %v534
    %v583 = vunpack.c.h.b16 %v534
    %v584 = vunpack.c.l.b16 %v535
    %v585 = vunpack.c.h.b16 %v535
    %v586 = vunpack.c.l.b16 %v536
    %v587 = vunpack.c.h.b16 %v536
    %v588 = vunpack.c.l.b16 %v537
    %v589 = vunpack.c.h.b16 %v537
    %v590 = vunpack.c.l.b16 %v538
    %v591 = vunpack.c.h.b16 %v538
    %v592 = vunpack.c.l.b16 %v539
    %v593 = vunpack.c.h.b16 %v539
    %v594 = vpack.c.b16 %v562, %v558
    %v595 = vpack.c.b16 %v563, %v559
    %v596 = vpack.c.b16 %v564, %v560
    %v597 = vpack.c.b16 %v565, %v561
    %v598 = vpack.c.b16 %v570, %v566
    %v599 = vpack.c.b16 %v571, %v567
    %v600 = vpack.c.b16 %v572, %v568
    %v601 = vpack.c.b16 %v573, %v569
    %v602 = vpack.c.b16 %v578, %v574
    %v603 = vpack.c.b16 %v579, %v575
    %v604 = vpack.c.b16 %v580, %v576
    %v605 = vpack.c.b16 %v581, %v577
    %v606 = vpack.c.b16 %v586, %v582
    %v607 = vpack.c.b16 %v587, %v583
    %v608 = vpack.c.b16 %v588, %v584
    %v609 = vpack.c.b16 %v589, %v585
    %v610 = vpack.c.b16 %v590, %v590
    %v611 = vpack.c.b16 %v591, %v591
    %v612 = vpack.c.b16 %v592, %v592
    %v613 = vpack.c.b16 %v593, %v593
    %vm630 = vcmask 588800
    %v632 = vsel %vm630, %v521, 0
    %vm634 = vcmask 1043456
    %v636 = vsel %vm634, %v610, 0
    %v639 = vsel %vm634, %v611, 0
    %v642 = vsel %vm634, %v612, 0
    %v645 = vsel %vm634, %v613, 0
    %647 = vmatprep.subr.bf16.mxu0 %v595
    %648 = vmatpush1.bf16.msra.mxu0 %v594
    %649 = vmatprep.subr.bf16.mxu0 %v599
    %650 = vmatpush1.bf16.msra.mxu0 %v598
    %651 = vmatprep.subr.bf16.mxu0 %v603
    %652 = vmatpush1.bf16.msra.mxu0 %v602
    %653 = vmatprep.subr.bf16.mxu0 %v607
    %654 = vmatpush1.bf16.msra.mxu0 %v606
    %655 = vmatprep.subr.bf16.mxu0 %v639
    %656 = vmatpush1.bf16.msra.mxu0 %v636
    %657 = vmatprep.subr.bf16.mxu0 0
    %658 = vmatpush1.bf16.msra.mxu0 0
    %659 = vmatprep.subr.bf16.mxu0 0
    %660 = vmatpush1.bf16.msra.mxu0 0
    %661 = vmatprep.subr.bf16.mxu0 0
    %662 = vmatpush1.bf16.msra.mxu0 0
    %663 = vmatprep.subr.bf16.mxu0 0
    %664 = vmatpush1.bf16.msra.mxu0 0
    %665 = vmatprep.subr.bf16.mxu0 0
    %666 = vmatpush1.bf16.msra.mxu0 0
    %667 = vmatprep.subr.bf16.mxu0 0
    %668 = vmatpush1.bf16.msra.mxu0 0
    %669 = vmatprep.subr.bf16.mxu0 0
    %670 = vmatpush1.bf16.msra.mxu0 0
    %671 = vmatprep.subr.bf16.mxu0 0
    %672 = vmatpush1.bf16.msra.mxu0 0
    %673 = vmatprep.subr.bf16.mxu0 0
    %674 = vmatpush1.bf16.msra.mxu0 0
    %675 = vmatprep.subr.bf16.mxu0 0
    %676 = vmatpush1.bf16.msra.mxu0 0
    %677 = vmatprep.subr.bf16.mxu0 0
    %678 = vmatpush1.bf16.msra.mxu0 0
    %679 = vmatprep.mubr.bf16.mxu0 0
    %680 = vmatmul.mubr.bf16.gmra.mrb[0].mxu0 %v632
    %v681 = vpop.f32.mrb[0].mxu0
    %v682 = vadd.f32 0.0, %v681
    %v683 = vpop.f32.mrb[0].mxu0
    %v684 = vadd.f32 0.0, %v683
    %v685 = vpop.f32.mrb[0].mxu0
    %v686 = vpop.f32.mrb[0].mxu0
    %687 = vdwg.mxu0
    %688 = vmatprep.subr.bf16.mxu0 %v597
    %689 = vmatpush1.bf16.msra.mxu0 %v596
    %690 = vmatprep.subr.bf16.mxu0 %v601
    %691 = vmatpush1.bf16.msra.mxu0 %v600
    %692 = vmatprep.subr.bf16.mxu0 %v605
    %693 = vmatpush1.bf16.msra.mxu0 %v604
    %694 = vmatprep.subr.bf16.mxu0 %v609
    %695 = vmatpush1.bf16.msra.mxu0 %v608
    %696 = vmatprep.subr.bf16.mxu0 %v645
    %697 = vmatpush1.bf16.msra.mxu0 %v642
    %698 = vmatprep.subr.bf16.mxu0 0
    %699 = vmatpush1.bf16.msra.mxu0 0
    %700 = vmatprep.subr.bf16.mxu0 0
    %701 = vmatpush1.bf16.msra.mxu0 0
    %702 = vmatprep.subr.bf16.mxu0 0
    %703 = vmatpush1.bf16.msra.mxu0 0
    %704 = vmatprep.subr.bf16.mxu0 0
    %705 = vmatpush1.bf16.msra.mxu0 0
    %706 = vmatprep.subr.bf16.mxu0 0
    %707 = vmatpush1.bf16.msra.mxu0 0
    %708 = vmatprep.subr.bf16.mxu0 0
    %709 = vmatpush1.bf16.msra.mxu0 0
    %710 = vmatprep.subr.bf16.mxu0 0
    %711 = vmatpush1.bf16.msra.mxu0 0
    %712 = vmatprep.subr.bf16.mxu0 0
    %713 = vmatpush1.bf16.msra.mxu0 0
    %714 = vmatprep.subr.bf16.mxu0 0
    %715 = vmatpush1.bf16.msra.mxu0 0
    %716 = vmatprep.subr.bf16.mxu0 0
    %717 = vmatpush1.bf16.msra.mxu0 0
    %718 = vmatprep.subr.bf16.mxu0 0
    %719 = vmatpush1.bf16.msra.mxu0 0
    %720 = vmatprep.mubr.bf16.mxu0 0
    %721 = vmatmul.mubr.bf16.gmra.mrb[0].mxu0 %v632
    %v722 = vpop.f32.mrb[0].mxu0
    %v723 = vadd.f32 0.0, %v722
    %v724 = vpop.f32.mrb[0].mxu0
    %v725 = vadd.f32 0.0, %v724
    %v726 = vpop.f32.mrb[0].mxu0
    %v727 = vpop.f32.mrb[0].mxu0
    %728 = vdwg.mxu0
    %v729 = vmax.f32 %v682, 0.0
    %v730 = vmax.f32 %v684, 0.0
    %v731 = vmax.f32 %v723, 0.0
    %v732 = vmax.f32 %v725, 0.0
    %733 = vrot.lane.b32.xlu0 %v729, 17
    %v734 = vpop.permute.xlu0 %733
    %735 = vrot.lane.b32.xlu0 %v730, 17
    %v736 = vpop.permute.xlu0 %735
    %737 = vrot.lane.b32.xlu0 %v731, 17
    %v738 = vpop.permute.xlu0 %737
    %739 = vrot.lane.b32.xlu0 %v732, 17
    %v740 = vpop.permute.xlu0 %739
    %v741 = vsel %vm48, %v738, %v740
    %v742 = vsel %vm48, %v736, %v738
    %v743 = vsel %vm48, %v734, %v736
    %v744 = vsel %vm48, %v740, %v734
    %v745 = vld [vmem:[%s3] ss:$8 sm:$0xf]
    %v747 = vlaneseq
    %v748 = vshrl.u32 %v747, 7
    %v749 = vsub.s32 0, %v748
    %v750 = vrot.slane %v745, %v749
    %v751 = vlaneseq
    %v752 = vshrl.u32 %v751, 7
    %v753 = vsub.s32 1, %v752
    %v754 = vrot.slane %v745, %v753
    %v755 = vlaneseq
    %v756 = vshrl.u32 %v755, 7
    %v757 = vsub.s32 2, %v756
    %v758 = vrot.slane %v745, %v757
    %v759 = vlaneseq
    %v760 = vshrl.u32 %v759, 7
    %v761 = vsub.s32 3, %v760
    %v762 = vrot.slane %v745, %v761
    %v767 = vmul.f32 %v744, %v750
    %v768 = vmul.f32 %v743, %v754
    %v769 = vmul.f32 %v742, %v758
    %v770 = vmul.f32 %v741, %v762
    %v771 = vpack.c.bf16 %v767, %v767
    %v772 = vpack.c.bf16 %v768, %v768
    %v773 = vpack.c.bf16 %v769, %v769
    %v774 = vpack.c.bf16 %v770, %v770
    %v779 = vunpack.c.l.b16 %v771
    %v780 = vunpack.c.l.b16 %v772
    %v781 = vunpack.c.l.b16 %v773
    %v782 = vunpack.c.l.b16 %v774
    %v783 = vpack.c.b16 %v780, %v779
    %v784 = vpack.c.b16 %v782, %v781
    %787 = vst [vmem:[#allocation2] sm:$0xff] %v783
    %788 = vst [vmem:[#allocation2 + $0x8] sm:$0xff] %v784
    %789 = vrot.lane.b32.xlu0 %v729, 16
    %v790 = vpop.permute.xlu0 %789
    %791 = vrot.lane.b32.xlu0 %v730, 16
    %v792 = vpop.permute.xlu0 %791
    %793 = vrot.lane.b32.xlu0 %v731, 16
    %v794 = vpop.permute.xlu0 %793
    %795 = vrot.lane.b32.xlu0 %v732, 16
    %v796 = vpop.permute.xlu0 %795
    %v797 = vsel %vm105, %v794, %v796
    %v798 = vsel %vm105, %v792, %v794
    %v799 = vsel %vm105, %v790, %v792
    %v800 = vsel %vm105, %v796, %v790
    %v801 = vld [vmem:[%s110] ss:$8 sm:$0xf]
    %v803 = vlaneseq
    %v804 = vshrl.u32 %v803, 7
    %v805 = vsub.s32 0, %v804
    %v806 = vrot.slane %v801, %v805
    %v807 = vlaneseq
    %v808 = vshrl.u32 %v807, 7
    %v809 = vsub.s32 1, %v808
    %v810 = vrot.slane %v801, %v809
    %v811 = vlaneseq
    %v812 = vshrl.u32 %v811, 7
    %v813 = vsub.s32 2, %v812
    %v814 = vrot.slane %v801, %v813
    %v815 = vlaneseq
    %v816 = vshrl.u32 %v815, 7
    %v817 = vsub.s32 3, %v816
    %v818 = vrot.slane %v801, %v817
    %v823 = vmul.f32 %v800, %v806
    %v824 = vmul.f32 %v799, %v810
    %v825 = vmul.f32 %v798, %v814
    %v826 = vmul.f32 %v797, %v818
    %v827 = vpack.c.bf16 %v823, %v823
    %v828 = vpack.c.bf16 %v824, %v824
    %v829 = vpack.c.bf16 %v825, %v825
    %v830 = vpack.c.bf16 %v826, %v826
    %v835 = vunpack.c.l.b16 %v827
    %v836 = vunpack.c.l.b16 %v828
    %v837 = vunpack.c.l.b16 %v829
    %v838 = vunpack.c.l.b16 %v830
    %v839 = vpack.c.b16 %v836, %v835
    %v840 = vpack.c.b16 %v838, %v837
    %843 = vst [vmem:[#allocation2 + $0x10] sm:$0xff] %v839
    %844 = vst [vmem:[#allocation2 + $0x18] sm:$0xff] %v840
    %845 = vrot.lane.b32.xlu0 %v729, 15
    %v846 = vpop.permute.xlu0 %845
    %847 = vrot.lane.b32.xlu0 %v730, 15
    %v848 = vpop.permute.xlu0 %847
    %849 = vrot.lane.b32.xlu0 %v731, 15
    %v850 = vpop.permute.xlu0 %849
    %851 = vrot.lane.b32.xlu0 %v732, 15
    %v852 = vpop.permute.xlu0 %851
    %v853 = vsel %vm163, %v850, %v852
    %v854 = vsel %vm163, %v848, %v850
    %v855 = vsel %vm163, %v846, %v848
    %v856 = vsel %vm163, %v852, %v846
    %v857 = vld [vmem:[%s168] ss:$8 sm:$0xf]
    %v859 = vlaneseq
    %v860 = vshrl.u32 %v859, 7
    %v861 = vsub.s32 0, %v860
    %v862 = vrot.slane %v857, %v861
    %v863 = vlaneseq
    %v864 = vshrl.u32 %v863, 7
    %v865 = vsub.s32 1, %v864
    %v866 = vrot.slane %v857, %v865
    %v867 = vlaneseq
    %v868 = vshrl.u32 %v867, 7
    %v869 = vsub.s32 2, %v868
    %v870 = vrot.slane %v857, %v869
    %v871 = vlaneseq
    %v872 = vshrl.u32 %v871, 7
    %v873 = vsub.s32 3, %v872
    %v874 = vrot.slane %v857, %v873
    %v879 = vmul.f32 %v856, %v862
    %v880 = vmul.f32 %v855, %v866
    %v881 = vmul.f32 %v854, %v870
    %v882 = vmul.f32 %v853, %v874
    %v883 = vpack.c.bf16 %v879, %v879
    %v884 = vpack.c.bf16 %v880, %v880
    %v885 = vpack.c.bf16 %v881, %v881
    %v886 = vpack.c.bf16 %v882, %v882
    %v891 = vunpack.c.l.b16 %v883
    %v892 = vunpack.c.l.b16 %v884
    %v893 = vunpack.c.l.b16 %v885
    %v894 = vunpack.c.l.b16 %v886
    %v895 = vpack.c.b16 %v892, %v891
    %v896 = vpack.c.b16 %v894, %v893
    %899 = vst [vmem:[#allocation2 + $0x20] sm:$0xff] %v895
    %900 = vst [vmem:[#allocation2 + $0x28] sm:$0xff] %v896
    %901 = vrot.lane.b32.xlu0 %v729, 1
    %v902 = vpop.permute.xlu0 %901
    %903 = vrot.lane.b32.xlu0 %v730, 1
    %v904 = vpop.permute.xlu0 %903
    %905 = vrot.lane.b32.xlu0 %v731, 1
    %v906 = vpop.permute.xlu0 %905
    %907 = vrot.lane.b32.xlu0 %v732, 1
    %v908 = vpop.permute.xlu0 %907
    %v909 = vsel %vm221, %v906, %v908
    %v910 = vsel %vm221, %v904, %v906
    %v911 = vsel %vm221, %v902, %v904
    %v912 = vsel %vm221, %v908, %v902
    %v913 = vld [vmem:[%s226] ss:$8 sm:$0xf]
    %v915 = vlaneseq
    %v916 = vshrl.u32 %v915, 7
    %v917 = vsub.s32 0, %v916
    %v918 = vrot.slane %v913, %v917
    %v919 = vlaneseq
    %v920 = vshrl.u32 %v919, 7
    %v921 = vsub.s32 1, %v920
    %v922 = vrot.slane %v913, %v921
    %v923 = vlaneseq
    %v924 = vshrl.u32 %v923, 7
    %v925 = vsub.s32 2, %v924
    %v926 = vrot.slane %v913, %v925
    %v927 = vlaneseq
    %v928 = vshrl.u32 %v927, 7
    %v929 = vsub.s32 3, %v928
    %v930 = vrot.slane %v913, %v929
    %v935 = vmul.f32 %v912, %v918
    %v936 = vmul.f32 %v911, %v922
    %v937 = vmul.f32 %v910, %v926
    %v938 = vmul.f32 %v909, %v930
    %v939 = vpack.c.bf16 %v935, %v935
    %v940 = vpack.c.bf16 %v936, %v936
    %v941 = vpack.c.bf16 %v937, %v937
    %v942 = vpack.c.bf16 %v938, %v938
    %v947 = vunpack.c.l.b16 %v939
    %v948 = vunpack.c.l.b16 %v940
    %v949 = vunpack.c.l.b16 %v941
    %v950 = vunpack.c.l.b16 %v942
    %v951 = vpack.c.b16 %v948, %v947
    %v952 = vpack.c.b16 %v950, %v949
    %955 = vst [vmem:[#allocation2 + $0x30] sm:$0xff] %v951
    %956 = vst [vmem:[#allocation2 + $0x38] sm:$0xff] %v952
    %v957 = vpack.c.bf16 %v729, %v729
    %v958 = vpack.c.bf16 %v730, %v730
    %v959 = vpack.c.bf16 %v731, %v731
    %v960 = vpack.c.bf16 %v732, %v732
    %v965 = vunpack.c.l.b16 %v957
    %v966 = vunpack.c.l.b16 %v958
    %v967 = vunpack.c.l.b16 %v959
    %v968 = vunpack.c.l.b16 %v960
    %v969 = vpack.c.b16 %v966, %v965
    %v970 = vpack.c.b16 %v968, %v967
    %973 = vst [vmem:[#allocation2 + $0x40] sm:$0xff] %v969
    %974 = vst [vmem:[#allocation2 + $0x48] sm:$0xff] %v970
    %975 = vrot.lane.b32.xlu0 %v729, 127
    %v976 = vpop.permute.xlu0 %975
    %977 = vrot.lane.b32.xlu0 %v730, 127
    %v978 = vpop.permute.xlu0 %977
    %979 = vrot.lane.b32.xlu0 %v731, 127
    %v980 = vpop.permute.xlu0 %979
    %981 = vrot.lane.b32.xlu0 %v732, 127
    %v982 = vpop.permute.xlu0 %981
    %v983 = vsel %vm297, %v980, %v982
    %v984 = vsel %vm297, %v978, %v980
    %v985 = vsel %vm297, %v976, %v978
    %v986 = vsel %vm297, %v982, %v976
    %v987 = vld [vmem:[%s302] ss:$8 sm:$0xf]
    %v989 = vlaneseq
    %v990 = vshrl.u32 %v989, 7
    %v991 = vsub.s32 0, %v990
    %v992 = vrot.slane %v987, %v991
    %v993 = vlaneseq
    %v994 = vshrl.u32 %v993, 7
    %v995 = vsub.s32 1, %v994
    %v996 = vrot.slane %v987, %v995
    %v997 = vlaneseq
    %v998 = vshrl.u32 %v997, 7
    %v999 = vsub.s32 2, %v998
    %v1000 = vrot.slane %v987, %v999
    %v1001 = vlaneseq
    %v1002 = vshrl.u32 %v1001, 7
    %v1003 = vsub.s32 3, %v1002
    %v1004 = vrot.slane %v987, %v1003
    %v1009 = vmul.f32 %v985, %v992
    %v1010 = vmul.f32 %v984, %v996
    %v1011 = vmul.f32 %v983, %v1000
    %v1012 = vmul.f32 %v986, %v1004
    %v1013 = vpack.c.bf16 %v1009, %v1009
    %v1014 = vpack.c.bf16 %v1010, %v1010
    %v1015 = vpack.c.bf16 %v1011, %v1011
    %v1016 = vpack.c.bf16 %v1012, %v1012
    %v1021 = vunpack.c.l.b16 %v1013
    %v1022 = vunpack.c.l.b16 %v1014
    %v1023 = vunpack.c.l.b16 %v1015
    %v1024 = vunpack.c.l.b16 %v1016
    %v1025 = vpack.c.b16 %v1022, %v1021
    %v1026 = vpack.c.b16 %v1024, %v1023
    %1029 = vst [vmem:[#allocation2 + $0x50] sm:$0xff] %v1025
    %1030 = vst [vmem:[#allocation2 + $0x58] sm:$0xff] %v1026
    %1031 = vrot.lane.b32.xlu0 %v729, 113
    %v1032 = vpop.permute.xlu0 %1031
    %1033 = vrot.lane.b32.xlu0 %v730, 113
    %v1034 = vpop.permute.xlu0 %1033
    %1035 = vrot.lane.b32.xlu0 %v731, 113
    %v1036 = vpop.permute.xlu0 %1035
    %1037 = vrot.lane.b32.xlu0 %v732, 113
    %v1038 = vpop.permute.xlu0 %1037
    %v1039 = vsel %vm355, %v1036, %v1038
    %v1040 = vsel %vm355, %v1034, %v1036
    %v1041 = vsel %vm355, %v1032, %v1034
    %v1042 = vsel %vm355, %v1038, %v1032
    %v1043 = vld [vmem:[%s360] ss:$8 sm:$0xf]
    %v1045 = vlaneseq
    %v1046 = vshrl.u32 %v1045, 7
    %v1047 = vsub.s32 0, %v1046
    %v1048 = vrot.slane %v1043, %v1047
    %v1049 = vlaneseq
    %v1050 = vshrl.u32 %v1049, 7
    %v1051 = vsub.s32 1, %v1050
    %v1052 = vrot.slane %v1043, %v1051
    %v1053 = vlaneseq
    %v1054 = vshrl.u32 %v1053, 7
    %v1055 = vsub.s32 2, %v1054
    %v1056 = vrot.slane %v1043, %v1055
    %v1057 = vlaneseq
    %v1058 = vshrl.u32 %v1057, 7
    %v1059 = vsub.s32 3, %v1058
    %v1060 = vrot.slane %v1043, %v1059
    %v1065 = vmul.f32 %v1041, %v1048
    %v1066 = vmul.f32 %v1040, %v1052
    %v1067 = vmul.f32 %v1039, %v1056
    %v1068 = vmul.f32 %v1042, %v1060
    %v1069 = vpack.c.bf16 %v1065, %v1065
    %v1070 = vpack.c.bf16 %v1066, %v1066
    %v1071 = vpack.c.bf16 %v1067, %v1067
    %v1072 = vpack.c.bf16 %v1068, %v1068
    %v1077 = vunpack.c.l.b16 %v1069
    %v1078 = vunpack.c.l.b16 %v1070
    %v1079 = vunpack.c.l.b16 %v1071
    %v1080 = vunpack.c.l.b16 %v1072
    %v1081 = vpack.c.b16 %v1078, %v1077
    %v1082 = vpack.c.b16 %v1080, %v1079
    %1085 = vst [vmem:[#allocation2 + $0x60] sm:$0xff] %v1081
    %1086 = vst [vmem:[#allocation2 + $0x68] sm:$0xff] %v1082
    %1087 = vrot.lane.b32.xlu0 %v729, 112
    %v1088 = vpop.permute.xlu0 %1087
    %1089 = vrot.lane.b32.xlu0 %v730, 112
    %v1090 = vpop.permute.xlu0 %1089
    %1091 = vrot.lane.b32.xlu0 %v731, 112
    %v1092 = vpop.permute.xlu0 %1091
    %1093 = vrot.lane.b32.xlu0 %v732, 112
    %v1094 = vpop.permute.xlu0 %1093
    %v1095 = vsel %vm413, %v1092, %v1094
    %v1096 = vsel %vm413, %v1090, %v1092
    %v1097 = vsel %vm413, %v1088, %v1090
    %v1098 = vsel %vm413, %v1094, %v1088
    %v1099 = vld [vmem:[%s418] ss:$8 sm:$0xf]
    %v1101 = vlaneseq
    %v1102 = vshrl.u32 %v1101, 7
    %v1103 = vsub.s32 0, %v1102
    %v1104 = vrot.slane %v1099, %v1103
    %v1105 = vlaneseq
    %v1106 = vshrl.u32 %v1105, 7
    %v1107 = vsub.s32 1, %v1106
    %v1108 = vrot.slane %v1099, %v1107
    %v1109 = vlaneseq
    %v1110 = vshrl.u32 %v1109, 7
    %v1111 = vsub.s32 2, %v1110
    %v1112 = vrot.slane %v1099, %v1111
    %v1113 = vlaneseq
    %v1114 = vshrl.u32 %v1113, 7
    %v1115 = vsub.s32 3, %v1114
    %v1116 = vrot.slane %v1099, %v1115
    %v1121 = vmul.f32 %v1097, %v1104
    %v1122 = vmul.f32 %v1096, %v1108
    %v1123 = vmul.f32 %v1095, %v1112
    %v1124 = vmul.f32 %v1098, %v1116
    %v1125 = vpack.c.bf16 %v1121, %v1121
    %v1126 = vpack.c.bf16 %v1122, %v1122
    %v1127 = vpack.c.bf16 %v1123, %v1123
    %v1128 = vpack.c.bf16 %v1124, %v1124
    %v1133 = vunpack.c.l.b16 %v1125
    %v1134 = vunpack.c.l.b16 %v1126
    %v1135 = vunpack.c.l.b16 %v1127
    %v1136 = vunpack.c.l.b16 %v1128
    %v1137 = vpack.c.b16 %v1134, %v1133
    %v1138 = vpack.c.b16 %v1136, %v1135
    %1141 = vst [vmem:[#allocation2 + $0x70] sm:$0xff] %v1137
    %1142 = vst [vmem:[#allocation2 + $0x78] sm:$0xff] %v1138
    %1143 = vrot.lane.b32.xlu0 %v729, 111
    %v1144 = vpop.permute.xlu0 %1143
    %1145 = vrot.lane.b32.xlu0 %v730, 111
    %v1146 = vpop.permute.xlu0 %1145
    %1147 = vrot.lane.b32.xlu0 %v731, 111
    %v1148 = vpop.permute.xlu0 %1147
    %1149 = vrot.lane.b32.xlu0 %v732, 111
    %v1150 = vpop.permute.xlu0 %1149
    %v1151 = vsel %vm471, %v1148, %v1150
    %v1152 = vsel %vm471, %v1146, %v1148
    %v1153 = vsel %vm471, %v1144, %v1146
    %v1154 = vsel %vm471, %v1150, %v1144
    %v1155 = vld [vmem:[%s476] ss:$8 sm:$0xf]
    %v1157 = vlaneseq
    %v1158 = vshrl.u32 %v1157, 7
    %v1159 = vsub.s32 0, %v1158
    %v1160 = vrot.slane %v1155, %v1159
    %v1161 = vlaneseq
    %v1162 = vshrl.u32 %v1161, 7
    %v1163 = vsub.s32 1, %v1162
    %v1164 = vrot.slane %v1155, %v1163
    %v1165 = vlaneseq
    %v1166 = vshrl.u32 %v1165, 7
    %v1167 = vsub.s32 2, %v1166
    %v1168 = vrot.slane %v1155, %v1167
    %v1169 = vlaneseq
    %v1170 = vshrl.u32 %v1169, 7
    %v1171 = vsub.s32 3, %v1170
    %v1172 = vrot.slane %v1155, %v1171
    %v1177 = vmul.f32 %v1153, %v1160
    %v1178 = vmul.f32 %v1152, %v1164
    %v1179 = vmul.f32 %v1151, %v1168
    %v1180 = vmul.f32 %v1154, %v1172
    %v1181 = vpack.c.bf16 %v1177, %v1177
    %v1182 = vpack.c.bf16 %v1178, %v1178
    %v1183 = vpack.c.bf16 %v1179, %v1179
    %v1184 = vpack.c.bf16 %v1180, %v1180
    %v1189 = vunpack.c.l.b16 %v1181
    %v1190 = vunpack.c.l.b16 %v1182
    %v1191 = vunpack.c.l.b16 %v1183
    %v1192 = vunpack.c.l.b16 %v1184
    %v1193 = vpack.c.b16 %v1190, %v1189
    %v1194 = vpack.c.b16 %v1192, %v1191
    %1197 = vst [vmem:[#allocation2 + $0x80] sm:$0xff] %v1193
    %1198 = vst [vmem:[#allocation2 + $0x88] sm:$0xff] %v1194
    %v1199 = vld [vmem:[%s2] sm:$0xf]
    %v1200 = vld [vmem:[#allocation2] sm:$0xff]
    %v1201 = vld [vmem:[#allocation2 + $0x8] sm:$0xff]
    %v1202 = vld [vmem:[#allocation2 + $0x10] sm:$0xff]
    %v1203 = vld [vmem:[#allocation2 + $0x18] sm:$0xff]
    %v1204 = vld [vmem:[#allocation2 + $0x20] sm:$0xff]
    %v1205 = vld [vmem:[#allocation2 + $0x28] sm:$0xff]
    %v1206 = vld [vmem:[#allocation2 + $0x30] sm:$0xff]
    %v1207 = vld [vmem:[#allocation2 + $0x38] sm:$0xff]
    %v1208 = vld [vmem:[#allocation2 + $0x40] sm:$0xff]
    %v1209 = vld [vmem:[#allocation2 + $0x48] sm:$0xff]
    %v1210 = vld [vmem:[#allocation2 + $0x50] sm:$0xff]
    %v1211 = vld [vmem:[#allocation2 + $0x58] sm:$0xff]
    %v1212 = vld [vmem:[#allocation2 + $0x60] sm:$0xff]
    %v1213 = vld [vmem:[#allocation2 + $0x68] sm:$0xff]
    %v1214 = vld [vmem:[#allocation2 + $0x70] sm:$0xff]
    %v1215 = vld [vmem:[#allocation2 + $0x78] sm:$0xff]
    %v1216 = vld [vmem:[#allocation2 + $0x80] sm:$0xff]
    %v1217 = vld [vmem:[#allocation2 + $0x88] sm:$0xff]
    %v1236 = vunpack.c.l.b16 %v1200
    %v1237 = vunpack.c.h.b16 %v1200
    %v1238 = vunpack.c.l.b16 %v1201
    %v1239 = vunpack.c.h.b16 %v1201
    %v1240 = vunpack.c.l.b16 %v1202
    %v1241 = vunpack.c.h.b16 %v1202
    %v1242 = vunpack.c.l.b16 %v1203
    %v1243 = vunpack.c.h.b16 %v1203
    %v1244 = vunpack.c.l.b16 %v1204
    %v1245 = vunpack.c.h.b16 %v1204
    %v1246 = vunpack.c.l.b16 %v1205
    %v1247 = vunpack.c.h.b16 %v1205
    %v1248 = vunpack.c.l.b16 %v1206
    %v1249 = vunpack.c.h.b16 %v1206
    %v1250 = vunpack.c.l.b16 %v1207
    %v1251 = vunpack.c.h.b16 %v1207
    %v1252 = vunpack.c.l.b16 %v1208
    %v1253 = vunpack.c.h.b16 %v1208
    %v1254 = vunpack.c.l.b16 %v1209
    %v1255 = vunpack.c.h.b16 %v1209
    %v1256 = vunpack.c.l.b16 %v1210
    %v1257 = vunpack.c.h.b16 %v1210
    %v1258 = vunpack.c.l.b16 %v1211
    %v1259 = vunpack.c.h.b16 %v1211
    %v1260 = vunpack.c.l.b16 %v1212
    %v1261 = vunpack.c.h.b16 %v1212
    %v1262 = vunpack.c.l.b16 %v1213
    %v1263 = vunpack.c.h.b16 %v1213
    %v1264 = vunpack.c.l.b16 %v1214
    %v1265 = vunpack.c.h.b16 %v1214
    %v1266 = vunpack.c.l.b16 %v1215
    %v1267 = vunpack.c.h.b16 %v1215
    %v1268 = vunpack.c.l.b16 %v1216
    %v1269 = vunpack.c.h.b16 %v1216
    %v1270 = vunpack.c.l.b16 %v1217
    %v1271 = vunpack.c.h.b16 %v1217
    %v1272 = vpack.c.b16 %v1240, %v1236
    %v1273 = vpack.c.b16 %v1241, %v1237
    %v1274 = vpack.c.b16 %v1242, %v1238
    %v1275 = vpack.c.b16 %v1243, %v1239
    %v1276 = vpack.c.b16 %v1248, %v1244
    %v1277 = vpack.c.b16 %v1249, %v1245
    %v1278 = vpack.c.b16 %v1250, %v1246
    %v1279 = vpack.c.b16 %v1251, %v1247
    %v1280 = vpack.c.b16 %v1256, %v1252
    %v1281 = vpack.c.b16 %v1257, %v1253
    %v1282 = vpack.c.b16 %v1258, %v1254
    %v1283 = vpack.c.b16 %v1259, %v1255
    %v1284 = vpack.c.b16 %v1264, %v1260
    %v1285 = vpack.c.b16 %v1265, %v1261
    %v1286 = vpack.c.b16 %v1266, %v1262
    %v1287 = vpack.c.b16 %v1267, %v1263
    %v1288 = vpack.c.b16 %v1268, %v1268
    %v1289 = vpack.c.b16 %v1269, %v1269
    %v1290 = vpack.c.b16 %v1270, %v1270
    %v1291 = vpack.c.b16 %v1271, %v1271
    %v1309 = vsel %vm630, %v1199, 0
    %v1312 = vsel %vm634, %v1288, 0
    %v1315 = vsel %vm634, %v1289, 0
    %v1318 = vsel %vm634, %v1290, 0
    %v1321 = vsel %vm634, %v1291, 0
    %1323 = vmatprep.subr.bf16.mxu0 %v1273
    %1324 = vmatpush1.bf16.msra.mxu0 %v1272
    %1325 = vmatprep.subr.bf16.mxu0 %v1277
    %1326 = vmatpush1.bf16.msra.mxu0 %v1276
    %1327 = vmatprep.subr.bf16.mxu0 %v1281
    %1328 = vmatpush1.bf16.msra.mxu0 %v1280
    %1329 = vmatprep.subr.bf16.mxu0 %v1285
    %1330 = vmatpush1.bf16.msra.mxu0 %v1284
    %1331 = vmatprep.subr.bf16.mxu0 %v1315
    %1332 = vmatpush1.bf16.msra.mxu0 %v1312
    %1333 = vmatprep.subr.bf16.mxu0 0
    %1334 = vmatpush1.bf16.msra.mxu0 0
    %1335 = vmatprep.subr.bf16.mxu0 0
    %1336 = vmatpush1.bf16.msra.mxu0 0
    %1337 = vmatprep.subr.bf16.mxu0 0
    %1338 = vmatpush1.bf16.msra.mxu0 0
    %1339 = vmatprep.subr.bf16.mxu0 0
    %1340 = vmatpush1.bf16.msra.mxu0 0
    %1341 = vmatprep.subr.bf16.mxu0 0
    %1342 = vmatpush1.bf16.msra.mxu0 0
    %1343 = vmatprep.subr.bf16.mxu0 0
    %1344 = vmatpush1.bf16.msra.mxu0 0
    %1345 = vmatprep.subr.bf16.mxu0 0
    %1346 = vmatpush1.bf16.msra.mxu0 0
    %1347 = vmatprep.subr.bf16.mxu0 0
    %1348 = vmatpush1.bf16.msra.mxu0 0
    %1349 = vmatprep.subr.bf16.mxu0 0
    %1350 = vmatpush1.bf16.msra.mxu0 0
    %1351 = vmatprep.subr.bf16.mxu0 0
    %1352 = vmatpush1.bf16.msra.mxu0 0
    %1353 = vmatprep.subr.bf16.mxu0 0
    %1354 = vmatpush1.bf16.msra.mxu0 0
    %1355 = vmatprep.mubr.bf16.mxu0 0
    %1356 = vmatmul.mubr.bf16.gmra.mrb[0].mxu0 %v1309
    %v1357 = vpop.f32.mrb[0].mxu0
    %v1358 = vadd.f32 %v33, %v1357
    %v1359 = vpop.f32.mrb[0].mxu0
    %v1360 = vadd.f32 %v34, %v1359
    %v1361 = vpop.f32.mrb[0].mxu0
    %v1362 = vpop.f32.mrb[0].mxu0
    %1363 = vdwg.mxu0
    %1364 = vmatprep.subr.bf16.mxu0 %v1275
    %1365 = vmatpush1.bf16.msra.mxu0 %v1274
    %1366 = vmatprep.subr.bf16.mxu0 %v1279
    %1367 = vmatpush1.bf16.msra.mxu0 %v1278
    %1368 = vmatprep.subr.bf16.mxu0 %v1283
    %1369 = vmatpush1.bf16.msra.mxu0 %v1282
    %1370 = vmatprep.subr.bf16.mxu0 %v1287
    %1371 = vmatpush1.bf16.msra.mxu0 %v1286
    %1372 = vmatprep.subr.bf16.mxu0 %v1321
    %1373 = vmatpush1.bf16.msra.mxu0 %v1318
    %1374 = vmatprep.subr.bf16.mxu0 0
    %1375 = vmatpush1.bf16.msra.mxu0 0
    %1376 = vmatprep.subr.bf16.mxu0 0
    %1377 = vmatpush1.bf16.msra.mxu0 0
    %1378 = vmatprep.subr.bf16.mxu0 0
    %1379 = vmatpush1.bf16.msra.mxu0 0
    %1380 = vmatprep.subr.bf16.mxu0 0
    %1381 = vmatpush1.bf16.msra.mxu0 0
    %1382 = vmatprep.subr.bf16.mxu0 0
    %1383 = vmatpush1.bf16.msra.mxu0 0
    %1384 = vmatprep.subr.bf16.mxu0 0
    %1385 = vmatpush1.bf16.msra.mxu0 0
    %1386 = vmatprep.subr.bf16.mxu0 0
    %1387 = vmatpush1.bf16.msra.mxu0 0
    %1388 = vmatprep.subr.bf16.mxu0 0
    %1389 = vmatpush1.bf16.msra.mxu0 0
    %1390 = vmatprep.subr.bf16.mxu0 0
    %1391 = vmatpush1.bf16.msra.mxu0 0
    %1392 = vmatprep.subr.bf16.mxu0 0
    %1393 = vmatpush1.bf16.msra.mxu0 0
    %1394 = vmatprep.subr.bf16.mxu0 0
    %1395 = vmatpush1.bf16.msra.mxu0 0
    %1396 = vmatprep.mubr.bf16.mxu0 0
    %1397 = vmatmul.mubr.bf16.gmra.mrb[0].mxu0 %v1309
    %v1398 = vpop.f32.mrb[0].mxu0
    %v1399 = vadd.f32 %v36, %v1398
    %v1400 = vpop.f32.mrb[0].mxu0
    %v1401 = vadd.f32 %v37, %v1400
    %v1402 = vpop.f32.mrb[0].mxu0
    %v1403 = vpop.f32.mrb[0].mxu0
    %1404 = vdwg.mxu0
    %1405 = vst [vmem:[#allocation6] sm:$0xff] %v1358
    %1406 = vst [vmem:[#allocation6 + $0x8] sm:$0xff] %v1360
    %s1407 = scalar_lea.vmem [#allocation6], 16
    %1408 = vst [vmem:[%s1407] sm:$0xff] %v1399
    %1409 = vst [vmem:[%s1407 + $0x8] sm:$0xff] %v1401
    // Predicated region
    $region22: #{tpu_custom_call.1} parent=1 // pred_check
      _
    $region23: #{tpu_custom_call.1} parent=1 // pred_check_branch
      %1411 = sbr.rel (0) target = $region25
    $region24: #{tpu_custom_call.1} parent=1 // pred_region
      %s1413 = ssub.s32 512, 512
      %1414 = vsyncadd [#allocation5], %s1413
      %s1415 = sshll.u32 [#allocation6], 4
      %s1416 = int_to_ptr.vmem [resolvable:$true] %s1415
      %1421 = dma.vmem_to_hbm [thread:$0]  %s1416, 512, %s4, [#allocation5], 256, 256, 16
    $region25: #{tpu_custom_call.1} parent=1 // pred_fallthru
      _
    // Predicated region
    $region26: #{tpu_custom_call.1} parent=1 // pred_check
      _
    $region27: #{tpu_custom_call.1} parent=1 // pred_check_branch
      %1423 = sbr.rel (0) target = $region29
    $region28: #{tpu_custom_call.1} parent=1 // pred_region
      %1424 = dma.done [#allocation5], 512
    $region29: #{tpu_custom_call.1} parent=1 // pred_fallthru
      _
    %1425 = vsyncpa [#allocation4], 1
    %1426 = vsyncpa [#allocation5], 1

</llo_original>
